<compile_context>
chip_gen: v7x
topology: tpu7x:2x2x1
jax: 0.10.0
libtpu: 0.0.40
codegen_flags: <defaults>
</compile_context>

<pallas_src>
import math
from functools import partial

import numpy as np
import jax
import jax.numpy as jnp
from jax.experimental import pallas as pl
from jax.experimental.pallas import tpu as pltpu


# --------------------------------------------------------------------------- #
# Kernel
# --------------------------------------------------------------------------- #
def alignment_kernel(x_ref, w_in_ref, b_in_ref, seg_ref, mask2_ref,
                     w_mf_ref, b_mf_ref, ln_g_ref, ln_b_ref,
                     o_ref, q_s, k_s, v_s, att_s,
                     *, num_heads, head_dim, seq_len, group):
    f32 = jnp.float32
    H, D, L, G = num_heads, head_dim, seq_len, group
    C = H * D
    HL = H * L
    inv_sqrt_d = 1.0 / math.sqrt(D)
    cdt = x_ref.dtype                          # bf16 compute dtype for MXU inputs

    x = x_ref[...]                             # (R, C) bf16, R = G*L rows

    # ---- fused input projection: columns = [ q | k | v | (downsample @ W_f) ] ----
    proj = jnp.dot(x, w_in_ref[...], preferred_element_type=f32) + b_in_ref[...]
    qkv = proj[:, :3 * C]                      # (R, 3C) f32
    shortcut_f = proj[:, 3 * C:]               # (R, OU) f32 (conv1x1+BN folded, @W_f)

    # ---- per-head L2 normalisation of q/k/v (F.normalize, dim=-1) ----------------
    # Segmented sum-of-squares on the MXU (bf16 block-diagonal `seg`), rsqrt on EUP.
    sq = (qkv * qkv).astype(cdt)
    sumsq = jnp.dot(sq, seg_ref[...], preferred_element_type=f32)    # (R, 3C)
    # x / max(||x||, 1e-12)  ==  x * rsqrt(max(||x||^2, 1e-24))
    qkv_n = qkv * jax.lax.rsqrt(jnp.maximum(sumsq, 1e-24))

    q_s[...] = qkv_n[:, :C].astype(cdt)        # bf16 staging for the attention loop
    k_s[...] = qkv_n[:, C:2 * C].astype(cdt)
    v_s[...] = qkv_n[:, 2 * C:].astype(cdt)

    mask2 = mask2_ref[...]                     # (HL, C) bf16, hoisted constant

    # ---- attention: one (b,t) slice per iteration, all heads per matmul ----------
    def slice_body(g, carry):
        base = g * L
        if not isinstance(base, int):          # dynamic index (fori_loop path)
            base = pl.multiple_of(base, L)
        rows = pl.ds(base, L)
        qg = q_s[rows, :]                      # (L, C) bf16
        kg = k_s[rows, :]
        vg = v_s[rows, :]
        # head-expanded K/V in bf16: row h*L+j holds position j masked to head h channels
        k_exp = jnp.broadcast_to(kg[None], (H, L, C)).reshape(HL, C) * mask2
        v_exp = jnp.broadcast_to(vg[None], (H, L, C)).reshape(HL, C) * mask2
        # scores[i, h*L+j] = <q_h[i], k_h[j]> ; q/k are per-head unit vectors so
        # |scores| <= 1 and exp needs no running-max subtraction (same softmax).
        scores = jnp.dot(qg, k_exp.T, preferred_element_type=f32)    # (L, HL)
        p = jnp.exp(scores * inv_sqrt_d).astype(cdt)
        # One fused (L,HL)x(HL,2C) MXU pass: [ P@V | per-channel softmax denominator ]
        pvd = jnp.dot(p, jnp.concatenate([v_exp, mask2], axis=1),
                      preferred_element_type=f32)                    # (L, 2C)
        att = pvd[:, :C] * pl.reciprocal(pvd[:, C:], approx=True)
        att_s[rows, :] = att.astype(cdt)
        return carry

    if G >= 8:
        jax.lax.fori_loop(0, G, slice_body, 0, unroll=4)
    else:
        for g in range(G):                     # static, G is small
            slice_body(g, 0)

    # ---- folded affine tail: SelfAttention.m + residual + FFN Linear -------------
    h = (jnp.dot(att_s[...], w_mf_ref[...], preferred_element_type=f32)
         + b_mf_ref[...] + shortcut_f)         # (R, OU) f32

    # ---- LayerNorm + GELU (tanh approximation of erf GELU) -----------------------
    mu = jnp.mean(h, axis=-1, keepdims=True)
    var = jnp.mean(jnp.square(h - mu), axis=-1, keepdims=True)
    hn = (h - mu) * jax.lax.rsqrt(var + 1e-5) * ln_g_ref[...] + ln_b_ref[...]
    out = 0.5 * hn * (1.0 + jnp.tanh(0.7978845608028654 * (hn + 0.044715 * hn * hn * hn)))
    o_ref[...] = out.astype(o_ref.dtype)


# --------------------------------------------------------------------------- #
# Wrapper
# --------------------------------------------------------------------------- #
def _choose_tiling(bt, seq_len):
    """Pick (b,t)-slices-per-step and a scoped VMEM limit per TPU generation.

    v5e/v6e: one TensorCore -> no benefit from >1 grid step, go for big tiles.
    v7x: 2 TensorCores (64 MiB VMEM/core) -> keep >= 2 "parallel" grid steps.
    Non-divisible bt is handled by padding in the caller (never tiny fallback tiles).
    """
    kind = ""
    try:
        kind = jax.devices()[0].device_kind.lower()
    except Exception:
        pass
    if "v7" in kind:
        target_rows, vmem_limit, min_steps = 1024, 32 * 1024 * 1024, 2
    elif "v6" in kind:
        target_rows, vmem_limit, min_steps = 2048, 64 * 1024 * 1024, 1
    else:  # v5e / unknown: single TensorCore
        target_rows, vmem_limit, min_steps = 1024, 32 * 1024 * 1024, 1
    group = max(1, min(bt, target_rows // max(seq_len, 1)))
    if min_steps > 1 and bt >= min_steps:
        group = min(group, max(1, bt // min_steps))
    return group, vmem_limit


def _segment_masks(c, num_heads, seq_len):
    """Host-side constants (bf16): seg (3C,3C) head-block-diagonal; mask2 (H*L, C)."""
    d = c // num_heads
    idx3 = np.arange(3 * c)
    seg = (idx3[:, None] // d == idx3[None, :] // d)
    hl = num_heads * seq_len
    mask2 = (np.arange(hl)[:, None] // seq_len == np.arange(c)[None, :] // d)
    return (jnp.asarray(seg, jnp.bfloat16), jnp.asarray(mask2, jnp.bfloat16))


def alignment_forward(x, fused_params, *, num_heads=8, num_contexts=None):
    """x: (B, C, T, L) channels-first, as in the PyTorch module. Returns (B, OU, T, L)."""
    del num_contexts  # accepted for interface parity; unused by the original forward
    b, c, t, l = x.shape
    assert c % num_heads == 0
    head_dim = c // num_heads
    bt = b * t
    (w_in, b_in, w_mf, b_mf, ln_g, ln_b) = fused_params
    ou = w_mf.shape[1]

    # channels-last rows; bf16 only as MXU input (softmax / LN math stays f32 in-kernel).
    x_rows = jnp.transpose(x, (0, 2, 3, 1)).reshape(bt * l, c).astype(jnp.bfloat16)

    group, vmem_limit = _choose_tiling(bt, l)
    n_steps = int(pl.cdiv(bt, group))
    bt_pad = n_steps * group
    if bt_pad != bt:                           # pad (b,t) slices instead of shrinking tiles
        x_rows = jnp.concatenate(
            [x_rows, jnp.zeros(((bt_pad - bt) * l, c), x_rows.dtype)], axis=0)
    tile_rows = group * l

    seg, mask2 = _segment_masks(c, num_heads, l)

    def const_spec(arr):
        return pl.BlockSpec(arr.shape, lambda i: (0, 0))

    out_rows = pl.pallas_call(
        partial(alignment_kernel, num_heads=num_heads, head_dim=head_dim,
                seq_len=l, group=group),
        out_shape=jax.ShapeDtypeStruct((bt_pad * l, ou), jnp.float32),
        grid=(n_steps,),
        in_specs=[pl.BlockSpec((tile_rows, c), lambda i: (i, 0)),
                  const_spec(w_in), const_spec(b_in),
                  const_spec(seg), const_spec(mask2),
                  const_spec(w_mf), const_spec(b_mf),
                  const_spec(ln_g), const_spec(ln_b)],
        out_specs=pl.BlockSpec((tile_rows, ou), lambda i: (i, 0)),
        scratch_shapes=[pltpu.VMEM((tile_rows, c), jnp.bfloat16)
                        for _ in range(4)],          # q, k, v, attention staging (bf16)
        compiler_params=pltpu.CompilerParams(
            dimension_semantics=("parallel",),
            vmem_limit_bytes=vmem_limit),
    )(x_rows,
      w_in.astype(jnp.bfloat16), b_in,
      seg, mask2,
      w_mf.astype(jnp.bfloat16), b_mf,
      ln_g, ln_b)

    out_rows = out_rows[:bt * l]
    return jnp.transpose(out_rows.reshape(b, t, l, ou), (0, 3, 1, 2))


# --------------------------------------------------------------------------- #
# Parameters (PyTorch-style init, eval mode) and host-side folding/fusion
# --------------------------------------------------------------------------- #
def make_module_params(key, c, ou):
    """Raw params mirroring the PyTorch modules. Weights are (in, out): y = x @ W + b."""
    ks = jax.random.split(key, 16)

    def lin_w(k, n_in, n_out):
        bound = 1.0 / math.sqrt(n_in)
        return jax.random.uniform(k, (n_in, n_out), jnp.float32, -bound, bound)

    def lin_b(k, n_in, n_out):
        bound = 1.0 / math.sqrt(n_in)
        return jax.random.uniform(k, (n_out,), jnp.float32, -bound, bound)

    return dict(
        wq=lin_w(ks[0], c, c),       bq=lin_b(ks[1], c, c),
        wkv=lin_w(ks[2], c, 2 * c),  bkv=lin_b(ks[3], c, 2 * c),
        wm=lin_w(ks[4], c, c),       bm=lin_b(ks[5], c, c),
        conv_w=lin_w(ks[6], c, c),   conv_b=lin_b(ks[7], c, c),
        bn_gamma=jax.random.uniform(ks[8], (c,), jnp.float32, 0.5, 1.5),
        bn_beta=jax.random.uniform(ks[9], (c,), jnp.float32, -0.1, 0.1),
        bn_mean=jax.random.uniform(ks[10], (c,), jnp.float32, -0.2, 0.2),
        bn_var=jax.random.uniform(ks[11], (c,), jnp.float32, 0.5, 1.5),
        wf=lin_w(ks[12], c, ou),     bf=lin_b(ks[13], c, ou),
        ln_gamma=jax.random.uniform(ks[14], (ou,), jnp.float32, 0.8, 1.2),
        ln_beta=jax.random.uniform(ks[15], (ou,), jnp.float32, -0.1, 0.1),
    )


def fuse_params(raw, bn_eps=1e-5):
    """Fold conv1x1+BN (eval) into a linear, then fold the purely-affine tail.

    Eval mode has no nonlinearity between SelfAttention.m, the residual add and the
    FFN Linear, so:  h = att @ (W_m@W_f) + x @ (W_ds@W_f) + (b_m + b_ds)@W_f + b_f.
    (Only valid in eval mode with identity dropouts.)
    """
    c = raw["wq"].shape[0]
    scale = raw["bn_gamma"] / jnp.sqrt(raw["bn_var"] + bn_eps)
    w_ds = raw["conv_w"] * scale[None, :]
    b_ds = (raw["conv_b"] - raw["bn_mean"]) * scale + raw["bn_beta"]
    w_dsf = w_ds @ raw["wf"]                       # shortcut folded through FFN Linear
    b_dsf = b_ds @ raw["wf"]
    w_mf = raw["wm"] @ raw["wf"]                   # SelfAttention.m folded through FFN Linear
    b_mf = raw["bm"] @ raw["wf"] + raw["bf"]
    w_in = jnp.concatenate(
        [raw["wq"], raw["wkv"][:, :c], raw["wkv"][:, c:], w_dsf], axis=1)
    b_in = jnp.concatenate([raw["bq"], raw["bkv"][:c], raw["bkv"][c:], b_dsf])[None, :]
    return (w_in, b_in, w_mf, b_mf[None, :],
            raw["ln_gamma"][None, :], raw["ln_beta"][None, :])


# --------------------------------------------------------------------------- #
# Pure-JAX float32 reference (mirrors the PyTorch forward, eval mode)
# --------------------------------------------------------------------------- #
def alignment_reference(x, raw, *, num_heads=8):
    b, c, t, l = x.shape
    d = c // num_heads
    xcl = jnp.transpose(x, (0, 2, 3, 1))                            # (b, t, l, c)

    # downsample: 1x1 conv + BatchNorm2d (eval), no activation
    conv = xcl @ raw["conv_w"] + raw["conv_b"]
    scale = raw["bn_gamma"] / jnp.sqrt(raw["bn_var"] + 1e-5)
    shortcut = (conv - raw["bn_mean"]) * scale + raw["bn_beta"]

    # SelfAttention (dropouts are identity in eval mode)
    def heads(y, n):
        return y.reshape(b, t, l, n, d).transpose(0, 1, 3, 2, 4)

    def normalize(y):
        nrm = jnp.sqrt(jnp.sum(y * y, axis=-1, keepdims=True))
        return y / jnp.maximum(nrm, 1e-12)

    q = normalize(heads(xcl @ raw["wq"] + raw["bq"], num_heads))
    kv = heads(xcl @ raw["wkv"] + raw["bkv"], 2 * num_heads)
    k, v = normalize(kv[:, :, :num_heads]), normalize(kv[:, :, num_heads:])
    att = jax.nn.softmax(
        jnp.einsum('bthid,bthjd->bthij', q, k) / math.sqrt(d), axis=-1)
    y = jnp.einsum('bthij,bthjd->bthid', att, v)
    y = y.transpose(0, 1, 3, 2, 4).reshape(b, t, l, c)
    y = y @ raw["wm"] + raw["bm"]

    out = y + shortcut                                              # drop: identity
    # FFN: Linear -> LayerNorm -> GELU (exact erf GELU, as nn.GELU default)
    h = out @ raw["wf"] + raw["bf"]
    mu = jnp.mean(h, axis=-1, keepdims=True)
    var = jnp.mean(jnp.square(h - mu), axis=-1, keepdims=True)
    hn = (h - mu) / jnp.sqrt(var + 1e-5) * raw["ln_gamma"] + raw["ln_beta"]
    hn = jax.nn.gelu(hn, approximate=False)
    return jnp.transpose(hn, (0, 3, 1, 2))                          # (b, ou, t, l)


# --------------------------------------------------------------------------- #
if __name__ == "__main__":
    # Small shapes consistent with the module: x is (B, C, T, L), C % heads == 0.
    # C = OU = 128 keeps every tensor (and the output stores) fully 128-lane dense.
    B, T, L, C, OU, HEADS = 2, 2, 16, 128, 128, 8

    key = jax.random.PRNGKey(0)
    kx, kp = jax.random.split(key)
    x = jax.random.normal(kx, (B, C, T, L), jnp.float32)
    raw = make_module_params(kp, C, OU)
    fused = fuse_params(raw)

    out = alignment_forward(x, fused, num_heads=HEADS, num_contexts=T)
    out = jax.block_until_ready(out)

    ref = alignment_reference(x, raw, num_heads=HEADS)
    assert out.shape == (B, OU, T, L)
    # Tolerance covers the intentional approximations: bf16 MXU inputs (f32 accum),
    # bf16 segmented sum-of-squares, approx EUP reciprocal in the softmax, the host-side
    # W_m@W_f / W_ds@W_f folds and tanh-GELU, all amplified by the final LayerNorm.
    max_err = jnp.max(jnp.abs(out - ref))
    assert jnp.allclose(out, ref, atol=5e-2, rtol=5e-2), f"max abs err {max_err}"

    print("KERNEL_OK")
</pallas_src>

<mosaic_0001>
module attributes {stable_mosaic.version = 11 : i64} {
  func.func @alignment_kernel(%arg0: i32, %arg1: memref<64x128xbf16, #tpu.memory_space<vmem>>, %arg2: memref<128x512xbf16, #tpu.memory_space<vmem>>, %arg3: memref<1x512xf32, #tpu.memory_space<vmem>>, %arg4: memref<384x384xbf16, #tpu.memory_space<vmem>>, %arg5: memref<128x128xbf16, #tpu.memory_space<vmem>>, %arg6: memref<128x128xbf16, #tpu.memory_space<vmem>>, %arg7: memref<1x128xf32, #tpu.memory_space<vmem>>, %arg8: memref<1x128xf32, #tpu.memory_space<vmem>>, %arg9: memref<1x128xf32, #tpu.memory_space<vmem>>, %arg10: memref<64x128xf32, #tpu.memory_space<vmem>>, %arg11: memref<64x128xbf16, #tpu.memory_space<vmem>>, %arg12: memref<64x128xbf16, #tpu.memory_space<vmem>>, %arg13: memref<64x128xbf16, #tpu.memory_space<vmem>>, %arg14: memref<64x128xbf16, #tpu.memory_space<vmem>>) attributes {dimension_semantics = [#tpu.dimension_semantics<parallel>], iteration_bounds = array<i64: 1>, scalar_prefetch = 0 : i64, scratch_operands = 4 : i64, tpu.core_type = #tpu.core_type<tc>, window_params = [{transform_indices = @transform_0, window_bounds = array<i64: 64, 128>}, {pipeline_mode = #tpu.pipeline_mode<synchronous>, transform_indices = @transform_1, window_bounds = array<i64: 128, 512>}, {pipeline_mode = #tpu.pipeline_mode<synchronous>, transform_indices = @transform_2, window_bounds = array<i64: 1, 512>}, {pipeline_mode = #tpu.pipeline_mode<synchronous>, transform_indices = @transform_3, window_bounds = array<i64: 384, 384>}, {pipeline_mode = #tpu.pipeline_mode<synchronous>, transform_indices = @transform_4, window_bounds = array<i64: 128, 128>}, {pipeline_mode = #tpu.pipeline_mode<synchronous>, transform_indices = @transform_5, window_bounds = array<i64: 128, 128>}, {pipeline_mode = #tpu.pipeline_mode<synchronous>, transform_indices = @transform_6, window_bounds = array<i64: 1, 128>}, {pipeline_mode = #tpu.pipeline_mode<synchronous>, transform_indices = @transform_7, window_bounds = array<i64: 1, 128>}, {pipeline_mode = #tpu.pipeline_mode<synchronous>, transform_indices = @transform_8, window_bounds = array<i64: 1, 128>}, {transform_indices = @transform_9, window_bounds = array<i64: 64, 128>}]} {
    %c0 = arith.constant 0 : index
    %c0_0 = arith.constant 0 : index
    %0 = vector.load %arg1[%c0, %c0_0] : memref<64x128xbf16, #tpu.memory_space<vmem>>, vector<64x128xbf16>
    %c0_1 = arith.constant 0 : index
    %c0_2 = arith.constant 0 : index
    %1 = vector.load %arg2[%c0_1, %c0_2] : memref<128x512xbf16, #tpu.memory_space<vmem>>, vector<128x512xbf16>
    %cst = arith.constant dense<0.000000e+00> : vector<64x512xf32>
    %2 = tpu.matmul %0, %1, %cst {dimension_numbers = #tpu.dot_dimension_numbers<[1], [0], [0], [1], [0, 0, 1, 1], [], []>} : vector<64x128xbf16>, vector<128x512xbf16>, vector<64x512xf32> -> vector<64x512xf32>
    %c0_3 = arith.constant 0 : index
    %c0_4 = arith.constant 0 : index
    %3 = vector.load %arg3[%c0_3, %c0_4] : memref<1x512xf32, #tpu.memory_space<vmem>>, vector<1x512xf32>
    %4 = vector.broadcast %3 : vector<1x512xf32> to vector<64x512xf32>
    %5 = arith.addf %2, %4 : vector<64x512xf32>
    %6 = vector.extract_strided_slice %5 {offsets = [0, 0], sizes = [64, 384], strides = [1, 1]} : vector<64x512xf32> to vector<64x384xf32>
    %7 = vector.extract_strided_slice %5 {offsets = [0, 384], sizes = [64, 128], strides = [1, 1]} : vector<64x512xf32> to vector<64x128xf32>
    %8 = arith.mulf %6, %6 : vector<64x384xf32>
    %9 = arith.truncf %8 : vector<64x384xf32> to vector<64x384xbf16>
    %c0_5 = arith.constant 0 : index
    %c0_6 = arith.constant 0 : index
    %10 = vector.load %arg4[%c0_5, %c0_6] : memref<384x384xbf16, #tpu.memory_space<vmem>>, vector<384x384xbf16>
    %cst_7 = arith.constant dense<0.000000e+00> : vector<64x384xf32>
    %11 = tpu.matmul %9, %10, %cst_7 {dimension_numbers = #tpu.dot_dimension_numbers<[1], [0], [0], [1], [0, 0, 1, 1], [], []>} : vector<64x384xbf16>, vector<384x384xbf16>, vector<64x384xf32> -> vector<64x384xf32>
    %cst_8 = arith.constant 1.000000e-24 : f32
    %12 = vector.broadcast %cst_8 : f32 to vector<64x384xf32>
    %13 = arith.maximumf %11, %12 : vector<64x384xf32>
    %14 = math.rsqrt %13 : vector<64x384xf32>
    %15 = arith.mulf %6, %14 : vector<64x384xf32>
    %16 = vector.extract_strided_slice %15 {offsets = [0, 0], sizes = [64, 128], strides = [1, 1]} : vector<64x384xf32> to vector<64x128xf32>
    %17 = arith.truncf %16 : vector<64x128xf32> to vector<64x128xbf16>
    %c0_9 = arith.constant 0 : index
    %c0_10 = arith.constant 0 : index
    %18 = vector.load %arg11[%c0_9, %c0_10] : memref<64x128xbf16, #tpu.memory_space<vmem>>, vector<64x128xbf16>
    tpu.vector_store %arg11[%c0_9, %c0_10], %17 {strides = array<i32>} : memref<64x128xbf16, #tpu.memory_space<vmem>>, vector<64x128xbf16>,
    %19 = vector.extract_strided_slice %15 {offsets = [0, 128], sizes = [64, 128], strides = [1, 1]} : vector<64x384xf32> to vector<64x128xf32>
    %20 = arith.truncf %19 : vector<64x128xf32> to vector<64x128xbf16>
    %c0_11 = arith.constant 0 : index
    %c0_12 = arith.constant 0 : index
    %21 = vector.load %arg12[%c0_11, %c0_12] : memref<64x128xbf16, #tpu.memory_space<vmem>>, vector<64x128xbf16>
    tpu.vector_store %arg12[%c0_11, %c0_12], %20 {strides = array<i32>} : memref<64x128xbf16, #tpu.memory_space<vmem>>, vector<64x128xbf16>,
    %22 = vector.extract_strided_slice %15 {offsets = [0, 256], sizes = [64, 128], strides = [1, 1]} : vector<64x384xf32> to vector<64x128xf32>
    %23 = arith.truncf %22 : vector<64x128xf32> to vector<64x128xbf16>
    %c0_13 = arith.constant 0 : index
    %c0_14 = arith.constant 0 : index
    %24 = vector.load %arg13[%c0_13, %c0_14] : memref<64x128xbf16, #tpu.memory_space<vmem>>, vector<64x128xbf16>
    tpu.vector_store %arg13[%c0_13, %c0_14], %23 {strides = array<i32>} : memref<64x128xbf16, #tpu.memory_space<vmem>>, vector<64x128xbf16>,
    %c0_15 = arith.constant 0 : index
    %c0_16 = arith.constant 0 : index
    %25 = vector.load %arg5[%c0_15, %c0_16] : memref<128x128xbf16, #tpu.memory_space<vmem>>, vector<128x128xbf16>
    %c0_17 = arith.constant 0 : index
    %c0_18 = arith.constant 0 : index
    %26 = vector.load %arg11[%c0_17, %c0_18] : memref<64x128xbf16, #tpu.memory_space<vmem>>, vector<16x128xbf16>
    %c0_19 = arith.constant 0 : index
    %c0_20 = arith.constant 0 : index
    %27 = vector.load %arg12[%c0_19, %c0_20] : memref<64x128xbf16, #tpu.memory_space<vmem>>, vector<16x128xbf16>
    %c0_21 = arith.constant 0 : index
    %c0_22 = arith.constant 0 : index
    %28 = vector.load %arg13[%c0_21, %c0_22] : memref<64x128xbf16, #tpu.memory_space<vmem>>, vector<16x128xbf16>
    %29 = vector.shape_cast %27 : vector<16x128xbf16> to vector<1x16x128xbf16>
    %30 = vector.shape_cast %29 : vector<1x16x128xbf16> to vector<1x16x128xbf16>
    %31 = vector.broadcast %30 : vector<1x16x128xbf16> to vector<8x16x128xbf16>
    %32 = vector.shape_cast %31 : vector<8x16x128xbf16> to vector<128x128xbf16>
    %33 = arith.mulf %32, %25 : vector<128x128xbf16>
    %34 = vector.shape_cast %28 : vector<16x128xbf16> to vector<1x16x128xbf16>
    %35 = vector.shape_cast %34 : vector<1x16x128xbf16> to vector<1x16x128xbf16>
    %36 = vector.broadcast %35 : vector<1x16x128xbf16> to vector<8x16x128xbf16>
    %37 = vector.shape_cast %36 : vector<8x16x128xbf16> to vector<128x128xbf16>
    %38 = arith.mulf %37, %25 : vector<128x128xbf16>
    %39 = tpu.transpose %33, [1, 0] : vector<128x128xbf16> -> vector<128x128xbf16>
    %cst_23 = arith.constant dense<0.000000e+00> : vector<16x128xf32>
    %40 = tpu.matmul %26, %39, %cst_23 {dimension_numbers = #tpu.dot_dimension_numbers<[1], [0], [0], [1], [0, 0, 1, 1], [], []>} : vector<16x128xbf16>, vector<128x128xbf16>, vector<16x128xf32> -> vector<16x128xf32>
    %cst_24 = arith.constant 2.500000e-01 : f32
    %41 = vector.broadcast %cst_24 : f32 to vector<16x128xf32>
    %42 = arith.mulf %40, %41 : vector<16x128xf32>
    %43 = math.exp %42 : vector<16x128xf32>
    %44 = arith.truncf %43 : vector<16x128xf32> to vector<16x128xbf16>
    %45 = tpu.concatenate %38, %25 in 1 : vector<128x128xbf16>, vector<128x128xbf16> -> vector<128x256xbf16>
    %cst_25 = arith.constant dense<0.000000e+00> : vector<16x256xf32>
    %46 = tpu.matmul %44, %45, %cst_25 {dimension_numbers = #tpu.dot_dimension_numbers<[1], [0], [0], [1], [0, 0, 1, 1], [], []>} : vector<16x128xbf16>, vector<128x256xbf16>, vector<16x256xf32> -> vector<16x256xf32>
    %47 = vector.extract_strided_slice %46 {offsets = [0, 0], sizes = [16, 128], strides = [1, 1]} : vector<16x256xf32> to vector<16x128xf32>
    %48 = vector.extract_strided_slice %46 {offsets = [0, 128], sizes = [16, 128], strides = [1, 1]} : vector<16x256xf32> to vector<16x128xf32>
    %49 = tpu.reciprocal %48 {approx = true} : vector<16x128xf32> -> vector<16x128xf32>
    %50 = arith.mulf %47, %49 : vector<16x128xf32>
    %51 = arith.truncf %50 : vector<16x128xf32> to vector<16x128xbf16>
    %c0_26 = arith.constant 0 : index
    %c0_27 = arith.constant 0 : index
    %52 = vector.load %arg14[%c0_26, %c0_27] : memref<64x128xbf16, #tpu.memory_space<vmem>>, vector<16x128xbf16>
    tpu.vector_store %arg14[%c0_26, %c0_27], %51 {strides = array<i32>} : memref<64x128xbf16, #tpu.memory_space<vmem>>, vector<16x128xbf16>,
    %c16 = arith.constant 16 : index
    %c0_28 = arith.constant 0 : index
    %53 = vector.load %arg11[%c16, %c0_28] : memref<64x128xbf16, #tpu.memory_space<vmem>>, vector<16x128xbf16>
    %c16_29 = arith.constant 16 : index
    %c0_30 = arith.constant 0 : index
    %54 = vector.load %arg12[%c16_29, %c0_30] : memref<64x128xbf16, #tpu.memory_space<vmem>>, vector<16x128xbf16>
    %c16_31 = arith.constant 16 : index
    %c0_32 = arith.constant 0 : index
    %55 = vector.load %arg13[%c16_31, %c0_32] : memref<64x128xbf16, #tpu.memory_space<vmem>>, vector<16x128xbf16>
    %56 = vector.shape_cast %54 : vector<16x128xbf16> to vector<1x16x128xbf16>
    %57 = vector.shape_cast %56 : vector<1x16x128xbf16> to vector<1x16x128xbf16>
    %58 = vector.broadcast %57 : vector<1x16x128xbf16> to vector<8x16x128xbf16>
    %59 = vector.shape_cast %58 : vector<8x16x128xbf16> to vector<128x128xbf16>
    %60 = arith.mulf %59, %25 : vector<128x128xbf16>
    %61 = vector.shape_cast %55 : vector<16x128xbf16> to vector<1x16x128xbf16>
    %62 = vector.shape_cast %61 : vector<1x16x128xbf16> to vector<1x16x128xbf16>
    %63 = vector.broadcast %62 : vector<1x16x128xbf16> to vector<8x16x128xbf16>
    %64 = vector.shape_cast %63 : vector<8x16x128xbf16> to vector<128x128xbf16>
    %65 = arith.mulf %64, %25 : vector<128x128xbf16>
    %66 = tpu.transpose %60, [1, 0] : vector<128x128xbf16> -> vector<128x128xbf16>
    %cst_33 = arith.constant dense<0.000000e+00> : vector<16x128xf32>
    %67 = tpu.matmul %53, %66, %cst_33 {dimension_numbers = #tpu.dot_dimension_numbers<[1], [0], [0], [1], [0, 0, 1, 1], [], []>} : vector<16x128xbf16>, vector<128x128xbf16>, vector<16x128xf32> -> vector<16x128xf32>
    %cst_34 = arith.constant 2.500000e-01 : f32
    %68 = vector.broadcast %cst_34 : f32 to vector<16x128xf32>
    %69 = arith.mulf %67, %68 : vector<16x128xf32>
    %70 = math.exp %69 : vector<16x128xf32>
    %71 = arith.truncf %70 : vector<16x128xf32> to vector<16x128xbf16>
    %72 = tpu.concatenate %65, %25 in 1 : vector<128x128xbf16>, vector<128x128xbf16> -> vector<128x256xbf16>
    %cst_35 = arith.constant dense<0.000000e+00> : vector<16x256xf32>
    %73 = tpu.matmul %71, %72, %cst_35 {dimension_numbers = #tpu.dot_dimension_numbers<[1], [0], [0], [1], [0, 0, 1, 1], [], []>} : vector<16x128xbf16>, vector<128x256xbf16>, vector<16x256xf32> -> vector<16x256xf32>
    %74 = vector.extract_strided_slice %73 {offsets = [0, 0], sizes = [16, 128], strides = [1, 1]} : vector<16x256xf32> to vector<16x128xf32>
    %75 = vector.extract_strided_slice %73 {offsets = [0, 128], sizes = [16, 128], strides = [1, 1]} : vector<16x256xf32> to vector<16x128xf32>
    %76 = tpu.reciprocal %75 {approx = true} : vector<16x128xf32> -> vector<16x128xf32>
    %77 = arith.mulf %74, %76 : vector<16x128xf32>
    %78 = arith.truncf %77 : vector<16x128xf32> to vector<16x128xbf16>
    %c16_36 = arith.constant 16 : index
    %c0_37 = arith.constant 0 : index
    %79 = vector.load %arg14[%c16_36, %c0_37] : memref<64x128xbf16, #tpu.memory_space<vmem>>, vector<16x128xbf16>
    tpu.vector_store %arg14[%c16_36, %c0_37], %78 {strides = array<i32>} : memref<64x128xbf16, #tpu.memory_space<vmem>>, vector<16x128xbf16>,
    %c32 = arith.constant 32 : index
    %c0_38 = arith.constant 0 : index
    %80 = vector.load %arg11[%c32, %c0_38] : memref<64x128xbf16, #tpu.memory_space<vmem>>, vector<16x128xbf16>
    %c32_39 = arith.constant 32 : index
    %c0_40 = arith.constant 0 : index
    %81 = vector.load %arg12[%c32_39, %c0_40] : memref<64x128xbf16, #tpu.memory_space<vmem>>, vector<16x128xbf16>
    %c32_41 = arith.constant 32 : index
    %c0_42 = arith.constant 0 : index
    %82 = vector.load %arg13[%c32_41, %c0_42] : memref<64x128xbf16, #tpu.memory_space<vmem>>, vector<16x128xbf16>
    %83 = vector.shape_cast %81 : vector<16x128xbf16> to vector<1x16x128xbf16>
    %84 = vector.shape_cast %83 : vector<1x16x128xbf16> to vector<1x16x128xbf16>
    %85 = vector.broadcast %84 : vector<1x16x128xbf16> to vector<8x16x128xbf16>
    %86 = vector.shape_cast %85 : vector<8x16x128xbf16> to vector<128x128xbf16>
    %87 = arith.mulf %86, %25 : vector<128x128xbf16>
    %88 = vector.shape_cast %82 : vector<16x128xbf16> to vector<1x16x128xbf16>
    %89 = vector.shape_cast %88 : vector<1x16x128xbf16> to vector<1x16x128xbf16>
    %90 = vector.broadcast %89 : vector<1x16x128xbf16> to vector<8x16x128xbf16>
    %91 = vector.shape_cast %90 : vector<8x16x128xbf16> to vector<128x128xbf16>
    %92 = arith.mulf %91, %25 : vector<128x128xbf16>
    %93 = tpu.transpose %87, [1, 0] : vector<128x128xbf16> -> vector<128x128xbf16>
    %cst_43 = arith.constant dense<0.000000e+00> : vector<16x128xf32>
    %94 = tpu.matmul %80, %93, %cst_43 {dimension_numbers = #tpu.dot_dimension_numbers<[1], [0], [0], [1], [0, 0, 1, 1], [], []>} : vector<16x128xbf16>, vector<128x128xbf16>, vector<16x128xf32> -> vector<16x128xf32>
    %cst_44 = arith.constant 2.500000e-01 : f32
    %95 = vector.broadcast %cst_44 : f32 to vector<16x128xf32>
    %96 = arith.mulf %94, %95 : vector<16x128xf32>
    %97 = math.exp %96 : vector<16x128xf32>
    %98 = arith.truncf %97 : vector<16x128xf32> to vector<16x128xbf16>
    %99 = tpu.concatenate %92, %25 in 1 : vector<128x128xbf16>, vector<128x128xbf16> -> vector<128x256xbf16>
    %cst_45 = arith.constant dense<0.000000e+00> : vector<16x256xf32>
    %100 = tpu.matmul %98, %99, %cst_45 {dimension_numbers = #tpu.dot_dimension_numbers<[1], [0], [0], [1], [0, 0, 1, 1], [], []>} : vector<16x128xbf16>, vector<128x256xbf16>, vector<16x256xf32> -> vector<16x256xf32>
    %101 = vector.extract_strided_slice %100 {offsets = [0, 0], sizes = [16, 128], strides = [1, 1]} : vector<16x256xf32> to vector<16x128xf32>
    %102 = vector.extract_strided_slice %100 {offsets = [0, 128], sizes = [16, 128], strides = [1, 1]} : vector<16x256xf32> to vector<16x128xf32>
    %103 = tpu.reciprocal %102 {approx = true} : vector<16x128xf32> -> vector<16x128xf32>
    %104 = arith.mulf %101, %103 : vector<16x128xf32>
    %105 = arith.truncf %104 : vector<16x128xf32> to vector<16x128xbf16>
    %c32_46 = arith.constant 32 : index
    %c0_47 = arith.constant 0 : index
    %106 = vector.load %arg14[%c32_46, %c0_47] : memref<64x128xbf16, #tpu.memory_space<vmem>>, vector<16x128xbf16>
    tpu.vector_store %arg14[%c32_46, %c0_47], %105 {strides = array<i32>} : memref<64x128xbf16, #tpu.memory_space<vmem>>, vector<16x128xbf16>,
    %c48 = arith.constant 48 : index
    %c0_48 = arith.constant 0 : index
    %107 = vector.load %arg11[%c48, %c0_48] : memref<64x128xbf16, #tpu.memory_space<vmem>>, vector<16x128xbf16>
    %c48_49 = arith.constant 48 : index
    %c0_50 = arith.constant 0 : index
    %108 = vector.load %arg12[%c48_49, %c0_50] : memref<64x128xbf16, #tpu.memory_space<vmem>>, vector<16x128xbf16>
    %c48_51 = arith.constant 48 : index
    %c0_52 = arith.constant 0 : index
    %109 = vector.load %arg13[%c48_51, %c0_52] : memref<64x128xbf16, #tpu.memory_space<vmem>>, vector<16x128xbf16>
    %110 = vector.shape_cast %108 : vector<16x128xbf16> to vector<1x16x128xbf16>
    %111 = vector.shape_cast %110 : vector<1x16x128xbf16> to vector<1x16x128xbf16>
    %112 = vector.broadcast %111 : vector<1x16x128xbf16> to vector<8x16x128xbf16>
    %113 = vector.shape_cast %112 : vector<8x16x128xbf16> to vector<128x128xbf16>
    %114 = arith.mulf %113, %25 : vector<128x128xbf16>
    %115 = vector.shape_cast %109 : vector<16x128xbf16> to vector<1x16x128xbf16>
    %116 = vector.shape_cast %115 : vector<1x16x128xbf16> to vector<1x16x128xbf16>
    %117 = vector.broadcast %116 : vector<1x16x128xbf16> to vector<8x16x128xbf16>
    %118 = vector.shape_cast %117 : vector<8x16x128xbf16> to vector<128x128xbf16>
    %119 = arith.mulf %118, %25 : vector<128x128xbf16>
    %120 = tpu.transpose %114, [1, 0] : vector<128x128xbf16> -> vector<128x128xbf16>
    %cst_53 = arith.constant dense<0.000000e+00> : vector<16x128xf32>
    %121 = tpu.matmul %107, %120, %cst_53 {dimension_numbers = #tpu.dot_dimension_numbers<[1], [0], [0], [1], [0, 0, 1, 1], [], []>} : vector<16x128xbf16>, vector<128x128xbf16>, vector<16x128xf32> -> vector<16x128xf32>
    %cst_54 = arith.constant 2.500000e-01 : f32
    %122 = vector.broadcast %cst_54 : f32 to vector<16x128xf32>
    %123 = arith.mulf %121, %122 : vector<16x128xf32>
    %124 = math.exp %123 : vector<16x128xf32>
    %125 = arith.truncf %124 : vector<16x128xf32> to vector<16x128xbf16>
    %126 = tpu.concatenate %119, %25 in 1 : vector<128x128xbf16>, vector<128x128xbf16> -> vector<128x256xbf16>
    %cst_55 = arith.constant dense<0.000000e+00> : vector<16x256xf32>
    %127 = tpu.matmul %125, %126, %cst_55 {dimension_numbers = #tpu.dot_dimension_numbers<[1], [0], [0], [1], [0, 0, 1, 1], [], []>} : vector<16x128xbf16>, vector<128x256xbf16>, vector<16x256xf32> -> vector<16x256xf32>
    %128 = vector.extract_strided_slice %127 {offsets = [0, 0], sizes = [16, 128], strides = [1, 1]} : vector<16x256xf32> to vector<16x128xf32>
    %129 = vector.extract_strided_slice %127 {offsets = [0, 128], sizes = [16, 128], strides = [1, 1]} : vector<16x256xf32> to vector<16x128xf32>
    %130 = tpu.reciprocal %129 {approx = true} : vector<16x128xf32> -> vector<16x128xf32>
    %131 = arith.mulf %128, %130 : vector<16x128xf32>
    %132 = arith.truncf %131 : vector<16x128xf32> to vector<16x128xbf16>
    %c48_56 = arith.constant 48 : index
    %c0_57 = arith.constant 0 : index
    %133 = vector.load %arg14[%c48_56, %c0_57] : memref<64x128xbf16, #tpu.memory_space<vmem>>, vector<16x128xbf16>
    tpu.vector_store %arg14[%c48_56, %c0_57], %132 {strides = array<i32>} : memref<64x128xbf16, #tpu.memory_space<vmem>>, vector<16x128xbf16>,
    %c0_58 = arith.constant 0 : index
    %c0_59 = arith.constant 0 : index
    %134 = vector.load %arg14[%c0_58, %c0_59] : memref<64x128xbf16, #tpu.memory_space<vmem>>, vector<64x128xbf16>
    %c0_60 = arith.constant 0 : index
    %c0_61 = arith.constant 0 : index
    %135 = vector.load %arg6[%c0_60, %c0_61] : memref<128x128xbf16, #tpu.memory_space<vmem>>, vector<128x128xbf16>
    %cst_62 = arith.constant dense<0.000000e+00> : vector<64x128xf32>
    %136 = tpu.matmul %134, %135, %cst_62 {dimension_numbers = #tpu.dot_dimension_numbers<[1], [0], [0], [1], [0, 0, 1, 1], [], []>} : vector<64x128xbf16>, vector<128x128xbf16>, vector<64x128xf32> -> vector<64x128xf32>
    %c0_63 = arith.constant 0 : index
    %c0_64 = arith.constant 0 : index
    %137 = vector.load %arg7[%c0_63, %c0_64] : memref<1x128xf32, #tpu.memory_space<vmem>>, vector<1x128xf32>
    %138 = vector.broadcast %137 : vector<1x128xf32> to vector<64x128xf32>
    %139 = arith.addf %136, %138 : vector<64x128xf32>
    %140 = arith.addf %139, %7 : vector<64x128xf32>
    %cst_65 = arith.constant dense<0.000000e+00> : vector<64xf32>
    %141 = vector.multi_reduction <add>, %140, %cst_65 [1] : vector<64x128xf32> to vector<64xf32>
    %142 = vector.shape_cast %141 : vector<64xf32> to vector<64x1xf32>
    %cst_66 = arith.constant 1.280000e+02 : f32
    %143 = vector.broadcast %cst_66 : f32 to vector<64x1xf32>
    %144 = arith.divf %142, %143 : vector<64x1xf32>
    %145 = vector.broadcast %144 : vector<64x1xf32> to vector<64x128xf32>
    %146 = arith.subf %140, %145 : vector<64x128xf32>
    %147 = arith.mulf %146, %146 : vector<64x128xf32>
    %cst_67 = arith.constant dense<0.000000e+00> : vector<64xf32>
    %148 = vector.multi_reduction <add>, %147, %cst_67 [1] : vector<64x128xf32> to vector<64xf32>
    %149 = vector.shape_cast %148 : vector<64xf32> to vector<64x1xf32>
    %cst_68 = arith.constant 1.280000e+02 : f32
    %150 = vector.broadcast %cst_68 : f32 to vector<64x1xf32>
    %151 = arith.divf %149, %150 : vector<64x1xf32>
    %152 = vector.broadcast %144 : vector<64x1xf32> to vector<64x128xf32>
    %153 = arith.subf %140, %152 : vector<64x128xf32>
    %cst_69 = arith.constant 9.99999974E-6 : f32
    %154 = vector.broadcast %cst_69 : f32 to vector<64x1xf32>
    %155 = arith.addf %151, %154 : vector<64x1xf32>
    %156 = math.rsqrt %155 : vector<64x1xf32>
    %157 = vector.broadcast %156 : vector<64x1xf32> to vector<64x128xf32>
    %158 = arith.mulf %153, %157 : vector<64x128xf32>
    %c0_70 = arith.constant 0 : index
    %c0_71 = arith.constant 0 : index
    %159 = vector.load %arg8[%c0_70, %c0_71] : memref<1x128xf32, #tpu.memory_space<vmem>>, vector<1x128xf32>
    %160 = vector.broadcast %159 : vector<1x128xf32> to vector<64x128xf32>
    %161 = arith.mulf %158, %160 : vector<64x128xf32>
    %c0_72 = arith.constant 0 : index
    %c0_73 = arith.constant 0 : index
    %162 = vector.load %arg9[%c0_72, %c0_73] : memref<1x128xf32, #tpu.memory_space<vmem>>, vector<1x128xf32>
    %163 = vector.broadcast %162 : vector<1x128xf32> to vector<64x128xf32>
    %164 = arith.addf %161, %163 : vector<64x128xf32>
    %cst_74 = arith.constant 5.000000e-01 : f32
    %165 = vector.broadcast %cst_74 : f32 to vector<64x128xf32>
    %166 = arith.mulf %165, %164 : vector<64x128xf32>
    %cst_75 = arith.constant 4.471500e-02 : f32
    %167 = vector.broadcast %cst_75 : f32 to vector<64x128xf32>
    %168 = arith.mulf %167, %164 : vector<64x128xf32>
    %169 = arith.mulf %168, %164 : vector<64x128xf32>
    %170 = arith.mulf %169, %164 : vector<64x128xf32>
    %171 = arith.addf %164, %170 : vector<64x128xf32>
    %cst_76 = arith.constant 0.797884583 : f32
    %172 = vector.broadcast %cst_76 : f32 to vector<64x128xf32>
    %173 = arith.mulf %172, %171 : vector<64x128xf32>
    %174 = math.tanh %173 : vector<64x128xf32>
    %cst_77 = arith.constant 1.000000e+00 : f32
    %175 = vector.broadcast %cst_77 : f32 to vector<64x128xf32>
    %176 = arith.addf %175, %174 : vector<64x128xf32>
    %177 = arith.mulf %166, %176 : vector<64x128xf32>
    %c0_78 = arith.constant 0 : index
    %c0_79 = arith.constant 0 : index
    %178 = vector.load %arg10[%c0_78, %c0_79] : memref<64x128xf32, #tpu.memory_space<vmem>>, vector<64x128xf32>
    tpu.vector_store %arg10[%c0_78, %c0_79], %177 {strides = array<i32>} : memref<64x128xf32, #tpu.memory_space<vmem>>, vector<64x128xf32>,
    return
  }
  func.func @transform_0(%arg0: i32) -> (i32, i32) {
    %c0_i32 = arith.constant 0 : i32
    %c0_i32_0 = arith.constant 0 : i32
    return %arg0, %c0_i32 : i32, i32
  }
  func.func @transform_1(%arg0: i32) -> (i32, i32) {
    %c0_i32 = arith.constant 0 : i32
    %c0_i32_0 = arith.constant 0 : i32
    %c0_i32_1 = arith.constant 0 : i32
    return %c0_i32, %c0_i32_0 : i32, i32
  }
  func.func @transform_2(%arg0: i32) -> (i32, i32) {
    %c0_i32 = arith.constant 0 : i32
    %c0_i32_0 = arith.constant 0 : i32
    %c0_i32_1 = arith.constant 0 : i32
    return %c0_i32, %c0_i32_0 : i32, i32
  }
  func.func @transform_3(%arg0: i32) -> (i32, i32) {
    %c0_i32 = arith.constant 0 : i32
    %c0_i32_0 = arith.constant 0 : i32
    %c0_i32_1 = arith.constant 0 : i32
    return %c0_i32, %c0_i32_0 : i32, i32
  }
  func.func @transform_4(%arg0: i32) -> (i32, i32) {
    %c0_i32 = arith.constant 0 : i32
    %c0_i32_0 = arith.constant 0 : i32
    %c0_i32_1 = arith.constant 0 : i32
    return %c0_i32, %c0_i32_0 : i32, i32
  }
  func.func @transform_5(%arg0: i32) -> (i32, i32) {
    %c0_i32 = arith.constant 0 : i32
    %c0_i32_0 = arith.constant 0 : i32
    %c0_i32_1 = arith.constant 0 : i32
    return %c0_i32, %c0_i32_0 : i32, i32
  }
  func.func @transform_6(%arg0: i32) -> (i32, i32) {
    %c0_i32 = arith.constant 0 : i32
    %c0_i32_0 = arith.constant 0 : i32
    %c0_i32_1 = arith.constant 0 : i32
    return %c0_i32, %c0_i32_0 : i32, i32
  }
  func.func @transform_7(%arg0: i32) -> (i32, i32) {
    %c0_i32 = arith.constant 0 : i32
    %c0_i32_0 = arith.constant 0 : i32
    %c0_i32_1 = arith.constant 0 : i32
    return %c0_i32, %c0_i32_0 : i32, i32
  }
  func.func @transform_8(%arg0: i32) -> (i32, i32) {
    %c0_i32 = arith.constant 0 : i32
    %c0_i32_0 = arith.constant 0 : i32
    %c0_i32_1 = arith.constant 0 : i32
    return %c0_i32, %c0_i32_0 : i32, i32
  }
  func.func @transform_9(%arg0: i32) -> (i32, i32) {
    %c0_i32 = arith.constant 0 : i32
    %c0_i32_0 = arith.constant 0 : i32
    return %arg0, %c0_i32 : i32, i32
  }
}

</mosaic_0001>

<llo_original>
// kernel: tpu_custom_call.1
$region0: #{tpu_custom_call.1}
  #allocation0 [shape = 'u32[]', space=smem, size = 0x4, offset = 0x4, fixed_abs, tag = 'smem constant byte address 0x4 - core index']
  #allocation1 [shape = 'u32[144,128]{1,0:T(1,128)}', space=vmem, size = 0x12000, scoped, tag = 'internal scratch']
  #allocation2 [shape = 'bf16[64,128]{1,0:T(16,128)(2,1)}', space=vmem, size = 0x4000, scoped, tag = 'scratch operand']
  #allocation3 [shape = 'bf16[64,128]{1,0:T(16,128)(2,1)}', space=vmem, size = 0x4000, scoped, tag = 'scratch operand']
  #allocation4 [shape = 'bf16[64,128]{1,0:T(16,128)(2,1)}', space=vmem, size = 0x4000, scoped, tag = 'scratch operand']
  #allocation5 [shape = 'bf16[64,128]{1,0:T(16,128)(2,1)}', space=vmem, size = 0x4000, scoped, tag = 'scratch operand']
  %s0 = inlined_call_operand.hbm [shape: bf16[64,128], index: 0, kind: input, shape index: {}]
  %s1 = inlined_call_operand.hbm [shape: bf16[128,512], index: 1, kind: input, shape index: {}]
  %s2 = inlined_call_operand.vmem [shape: f32[1,512], index: 2, kind: input, shape index: {}]
  %s3 = inlined_call_operand.hbm [shape: bf16[384,384], index: 3, kind: input, shape index: {}]
  %s4 = inlined_call_operand.hbm [shape: bf16[128,128], index: 4, kind: input, shape index: {}]
  %s5 = inlined_call_operand.hbm [shape: bf16[128,128], index: 5, kind: input, shape index: {}]
  %s6 = inlined_call_operand.vmem [shape: f32[1,128], index: 6, kind: input, shape index: {}]
  %s7 = inlined_call_operand.vmem [shape: f32[1,128], index: 7, kind: input, shape index: {}]
  %s8 = inlined_call_operand.vmem [shape: f32[1,128], index: 8, kind: input, shape index: {}]
  %s9 = inlined_call_operand.hbm [shape: f32[64,128], index: 9, kind: output, shape index: {}]
  %s10 = sld [smem:[#allocation0]]
  $region66: #{tpu_custom_call.1} parent=0
    _
  %s12 = ssub.s32 1, %s10
  %s13 = scalar_select 0, %s12, %s10
  $region1: #{tpu_custom_call.1} parent=0
    #allocation6 [shape = 'u8[16384]{0}', space=vmem, size = 0x4000, scoped, tag = 'input window, operand 0, single buffered']
    #allocation7 [shape = 's32[1]{0}', space=sflag, size = 0x4, scoped, tag = 'scoped memory for tpu_custom_call.1']
    #allocation8 [shape = 's32[1]{0}', space=sflag, size = 0x4, scoped, tag = 'scoped memory for tpu_custom_call.1']
    #allocation9 [shape = 'u8[131072]{0}', space=vmem, size = 0x20000, scoped, tag = 'input window, operand 1, single buffered']
    #allocation10 [shape = 's32[1]{0}', space=sflag, size = 0x4, scoped, tag = 'scoped memory for tpu_custom_call.1']
    #allocation11 [shape = 'u8[294912]{0}', space=vmem, size = 0x48000, scoped, tag = 'input window, operand 3, single buffered']
    #allocation12 [shape = 'u8[32768]{0}', space=vmem, size = 0x8000, scoped, tag = 'input window, operand 4, single buffered']
    #allocation13 [shape = 's32[1]{0}', space=sflag, size = 0x4, scoped, tag = 'scoped memory for tpu_custom_call.1']
    #allocation14 [shape = 'u8[32768]{0}', space=vmem, size = 0x8000, scoped, tag = 'input window, operand 5, single buffered']
    #allocation15 [shape = 'u8[32768]{0}', space=vmem, size = 0x8000, scoped, tag = 'output window, operand 0, single buffered']
    %14 = vsyncpa [#allocation7], 0
    %15 = vsyncpa [#allocation10], 0
    %16 = vsyncpa [#allocation13], 0
    %17 = vsyncpa [#allocation8], 0
    // Predicated region
    $region2: #{tpu_custom_call.1} parent=1 // pred_check
      _
    $region3: #{tpu_custom_call.1} parent=1 // pred_check_branch
      %19 = sbr.rel (0) target = $region5
    $region4: #{tpu_custom_call.1} parent=1 // pred_region
      %s21 = ssub.s32 512, 512
      %22 = vsyncadd [#allocation7], %s21
      %s23 = sshll.u32 [#allocation6], 4
      %s24 = int_to_ptr.vmem [resolvable:$true] %s23
      %29 = dma.hbm_to_vmem [thread:$0]  %s0, 512, %s24, [#allocation7], 64, 64, 4
    $region5: #{tpu_custom_call.1} parent=1 // pred_fallthru
      _
    // Predicated region
    $region6: #{tpu_custom_call.1} parent=1 // pred_check
      _
    $region7: #{tpu_custom_call.1} parent=1 // pred_check_branch
      %31 = sbr.rel (0) target = $region9
    $region8: #{tpu_custom_call.1} parent=1 // pred_region
      %s33 = ssub.s32 4096, 4096
      %34 = vsyncadd [#allocation10], %s33
      %s35 = sshll.u32 [#allocation9], 4
      %s36 = int_to_ptr.vmem [resolvable:$true] %s35
      %41 = dma.hbm_to_vmem [thread:$0]  %s1, 4096, %s36, [#allocation10], 256, 256, 16
    $region9: #{tpu_custom_call.1} parent=1 // pred_fallthru
      _
    // Predicated region
    $region10: #{tpu_custom_call.1} parent=1 // pred_check
      _
    $region11: #{tpu_custom_call.1} parent=1 // pred_check_branch
      %43 = sbr.rel (0) target = $region13
    $region12: #{tpu_custom_call.1} parent=1 // pred_region
      _
    $region13: #{tpu_custom_call.1} parent=1 // pred_fallthru
      _
    // Predicated region
    $region14: #{tpu_custom_call.1} parent=1 // pred_check
      _
    $region15: #{tpu_custom_call.1} parent=1 // pred_check_branch
      %45 = sbr.rel (0) target = $region17
    $region16: #{tpu_custom_call.1} parent=1 // pred_region
      %s47 = ssub.s32 9216, 9216
      %48 = vsyncadd [#allocation10], %s47
      %s49 = sshll.u32 [#allocation11], 4
      %s50 = int_to_ptr.vmem [resolvable:$true] %s49
      %55 = dma.hbm_to_vmem [thread:$0]  %s3, 9216, %s50, [#allocation10], 192, 192, 12
    $region17: #{tpu_custom_call.1} parent=1 // pred_fallthru
      _
    // Predicated region
    $region18: #{tpu_custom_call.1} parent=1 // pred_check
      _
    $region19: #{tpu_custom_call.1} parent=1 // pred_check_branch
      %57 = sbr.rel (0) target = $region21
    $region20: #{tpu_custom_call.1} parent=1 // pred_region
      %s59 = ssub.s32 1024, 1024
      %60 = vsyncadd [#allocation13], %s59
      %s61 = sshll.u32 [#allocation12], 4
      %s62 = int_to_ptr.vmem [resolvable:$true] %s61
      %67 = dma.hbm_to_vmem [thread:$0]  %s4, 1024, %s62, [#allocation13], 64, 64, 4
    $region21: #{tpu_custom_call.1} parent=1 // pred_fallthru
      _
    // Predicated region
    $region22: #{tpu_custom_call.1} parent=1 // pred_check
      _
    $region23: #{tpu_custom_call.1} parent=1 // pred_check_branch
      %69 = sbr.rel (0) target = $region25
    $region24: #{tpu_custom_call.1} parent=1 // pred_region
      %s71 = ssub.s32 1024, 1024
      %72 = vsyncadd [#allocation13], %s71
      %s73 = sshll.u32 [#allocation14], 4
      %s74 = int_to_ptr.vmem [resolvable:$true] %s73
      %79 = dma.hbm_to_vmem [thread:$0]  %s5, 1024, %s74, [#allocation13], 64, 64, 4
    $region25: #{tpu_custom_call.1} parent=1 // pred_fallthru
      _
    // Predicated region
    $region26: #{tpu_custom_call.1} parent=1 // pred_check
      _
    $region27: #{tpu_custom_call.1} parent=1 // pred_check_branch
      %81 = sbr.rel (0) target = $region29
    $region28: #{tpu_custom_call.1} parent=1 // pred_region
      _
    $region29: #{tpu_custom_call.1} parent=1 // pred_fallthru
      _
    // Predicated region
    $region30: #{tpu_custom_call.1} parent=1 // pred_check
      _
    $region31: #{tpu_custom_call.1} parent=1 // pred_check_branch
      %83 = sbr.rel (0) target = $region33
    $region32: #{tpu_custom_call.1} parent=1 // pred_region
      _
    $region33: #{tpu_custom_call.1} parent=1 // pred_fallthru
      _
    // Predicated region
    $region34: #{tpu_custom_call.1} parent=1 // pred_check
      _
    $region35: #{tpu_custom_call.1} parent=1 // pred_check_branch
      %85 = sbr.rel (0) target = $region37
    $region36: #{tpu_custom_call.1} parent=1 // pred_region
      _
    $region37: #{tpu_custom_call.1} parent=1 // pred_fallthru
      _
    // Predicated region
    $region38: #{tpu_custom_call.1} parent=1 // pred_check
      _
    $region39: #{tpu_custom_call.1} parent=1 // pred_check_branch
      %87 = sbr.rel (0) target = $region41
    $region40: #{tpu_custom_call.1} parent=1 // pred_region
      %88 = dma.done [#allocation7], 512
    $region41: #{tpu_custom_call.1} parent=1 // pred_fallthru
      _
    // Predicated region
    $region42: #{tpu_custom_call.1} parent=1 // pred_check
      _
    $region43: #{tpu_custom_call.1} parent=1 // pred_check_branch
      %90 = sbr.rel (0) target = $region45
    $region44: #{tpu_custom_call.1} parent=1 // pred_region
      %91 = dma.done [#allocation10], 4096
    $region45: #{tpu_custom_call.1} parent=1 // pred_fallthru
      _
    // Predicated region
    $region46: #{tpu_custom_call.1} parent=1 // pred_check
      _
    $region47: #{tpu_custom_call.1} parent=1 // pred_check_branch
      %93 = sbr.rel (0) target = $region49
    $region48: #{tpu_custom_call.1} parent=1 // pred_region
      %94 = dma.done [#allocation10], 9216
    $region49: #{tpu_custom_call.1} parent=1 // pred_fallthru
      _
    // Predicated region
    $region50: #{tpu_custom_call.1} parent=1 // pred_check
      _
    $region51: #{tpu_custom_call.1} parent=1 // pred_check_branch
      %96 = sbr.rel (0) target = $region53
    $region52: #{tpu_custom_call.1} parent=1 // pred_region
      %97 = dma.done [#allocation13], 1024
    $region53: #{tpu_custom_call.1} parent=1 // pred_fallthru
      _
    // Predicated region
    $region54: #{tpu_custom_call.1} parent=1 // pred_check
      _
    $region55: #{tpu_custom_call.1} parent=1 // pred_check_branch
      %99 = sbr.rel (0) target = $region57
    $region56: #{tpu_custom_call.1} parent=1 // pred_region
      %100 = dma.done [#allocation13], 1024
    $region57: #{tpu_custom_call.1} parent=1 // pred_fallthru
      _
    %v102 = vld [vmem:[#allocation6] sm:$0xf]
    %v103 = vld [vmem:[#allocation6 + $0x4] sm:$0xf]
    %v104 = vld [vmem:[#allocation6 + $0x8] sm:$0xf]
    %v105 = vld [vmem:[#allocation6 + $0xc] sm:$0xf]
    %v106 = vld [vmem:[#allocation6 + $0x10] sm:$0xf]
    %v107 = vld [vmem:[#allocation6 + $0x14] sm:$0xf]
    %v108 = vld [vmem:[#allocation6 + $0x18] sm:$0xf]
    %v109 = vld [vmem:[#allocation6 + $0x1c] sm:$0xf]
    %v110 = vld [vmem:[#allocation9] sm:$0xff]
    %v111 = vld [vmem:[#allocation9 + $0x8] sm:$0xff]
    %v112 = vld [vmem:[#allocation9 + $0x10] sm:$0xff]
    %v113 = vld [vmem:[#allocation9 + $0x18] sm:$0xff]
    %v114 = vld [vmem:[#allocation9 + $0x20] sm:$0xff]
    %v115 = vld [vmem:[#allocation9 + $0x28] sm:$0xff]
    %v116 = vld [vmem:[#allocation9 + $0x30] sm:$0xff]
    %v117 = vld [vmem:[#allocation9 + $0x38] sm:$0xff]
    %v118 = vld [vmem:[#allocation9 + $0x40] sm:$0xff]
    %v119 = vld [vmem:[#allocation9 + $0x48] sm:$0xff]
    %v120 = vld [vmem:[#allocation9 + $0x50] sm:$0xff]
    %v121 = vld [vmem:[#allocation9 + $0x58] sm:$0xff]
    %v122 = vld [vmem:[#allocation9 + $0x60] sm:$0xff]
    %v123 = vld [vmem:[#allocation9 + $0x68] sm:$0xff]
    %v124 = vld [vmem:[#allocation9 + $0x70] sm:$0xff]
    %v125 = vld [vmem:[#allocation9 + $0x78] sm:$0xff]
    %v126 = vld [vmem:[#allocation9 + $0x80] sm:$0xff]
    %v127 = vld [vmem:[#allocation9 + $0x88] sm:$0xff]
    %v128 = vld [vmem:[#allocation9 + $0x90] sm:$0xff]
    %v129 = vld [vmem:[#allocation9 + $0x98] sm:$0xff]
    %v130 = vld [vmem:[#allocation9 + $0xa0] sm:$0xff]
    %v131 = vld [vmem:[#allocation9 + $0xa8] sm:$0xff]
    %v132 = vld [vmem:[#allocation9 + $0xb0] sm:$0xff]
    %v133 = vld [vmem:[#allocation9 + $0xb8] sm:$0xff]
    %v134 = vld [vmem:[#allocation9 + $0xc0] sm:$0xff]
    %v135 = vld [vmem:[#allocation9 + $0xc8] sm:$0xff]
    %v136 = vld [vmem:[#allocation9 + $0xd0] sm:$0xff]
    %v137 = vld [vmem:[#allocation9 + $0xd8] sm:$0xff]
    %v138 = vld [vmem:[#allocation9 + $0xe0] sm:$0xff]
    %v139 = vld [vmem:[#allocation9 + $0xe8] sm:$0xff]
    %v140 = vld [vmem:[#allocation9 + $0xf0] sm:$0xff]
    %v141 = vld [vmem:[#allocation9 + $0xf8] sm:$0xff]
    %v142 = vld [vmem:[%s2] sm:$0xf]
    %v144 = vlaneseq
    %v145 = vshrl.u32 %v144, 7
    %v146 = vsub.s32 0, %v145
    %v147 = vrot.slane %v142, %v146
    %v148 = vlaneseq
    %v149 = vshrl.u32 %v148, 7
    %v150 = vsub.s32 1, %v149
    %v151 = vrot.slane %v142, %v150
    %v152 = vlaneseq
    %v153 = vshrl.u32 %v152, 7
    %v154 = vsub.s32 2, %v153
    %v155 = vrot.slane %v142, %v154
    %v156 = vlaneseq
    %v157 = vshrl.u32 %v156, 7
    %v158 = vsub.s32 3, %v157
    %v159 = vrot.slane %v142, %v158
    %v172 = vunpack.c.l.b16 %v102
    %v173 = vunpack.c.l.b16 %v103
    %v174 = vunpack.c.l.b16 %v104
    %v175 = vunpack.c.l.b16 %v105
    %v176 = vunpack.c.l.b16 %v106
    %v177 = vunpack.c.l.b16 %v107
    %v178 = vunpack.c.l.b16 %v108
    %v179 = vunpack.c.l.b16 %v109
    %v180 = vpack.c.b16 %v173, %v172
    %v181 = vpack.c.b16 %v175, %v174
    %v182 = vpack.c.b16 %v177, %v176
    %v183 = vpack.c.b16 %v179, %v178
    %v220 = vunpack.c.l.b16 %v110
    %v221 = vunpack.c.h.b16 %v110
    %v222 = vunpack.c.l.b16 %v111
    %v223 = vunpack.c.h.b16 %v111
    %v224 = vunpack.c.l.b16 %v112
    %v225 = vunpack.c.h.b16 %v112
    %v226 = vunpack.c.l.b16 %v113
    %v227 = vunpack.c.h.b16 %v113
    %v228 = vunpack.c.l.b16 %v114
    %v229 = vunpack.c.h.b16 %v114
    %v230 = vunpack.c.l.b16 %v115
    %v231 = vunpack.c.h.b16 %v115
    %v232 = vunpack.c.l.b16 %v116
    %v233 = vunpack.c.h.b16 %v116
    %v234 = vunpack.c.l.b16 %v117
    %v235 = vunpack.c.h.b16 %v117
    %v236 = vunpack.c.l.b16 %v118
    %v237 = vunpack.c.h.b16 %v118
    %v238 = vunpack.c.l.b16 %v119
    %v239 = vunpack.c.h.b16 %v119
    %v240 = vunpack.c.l.b16 %v120
    %v241 = vunpack.c.h.b16 %v120
    %v242 = vunpack.c.l.b16 %v121
    %v243 = vunpack.c.h.b16 %v121
    %v244 = vunpack.c.l.b16 %v122
    %v245 = vunpack.c.h.b16 %v122
    %v246 = vunpack.c.l.b16 %v123
    %v247 = vunpack.c.h.b16 %v123
    %v248 = vunpack.c.l.b16 %v124
    %v249 = vunpack.c.h.b16 %v124
    %v250 = vunpack.c.l.b16 %v125
    %v251 = vunpack.c.h.b16 %v125
    %v252 = vunpack.c.l.b16 %v126
    %v253 = vunpack.c.h.b16 %v126
    %v254 = vunpack.c.l.b16 %v127
    %v255 = vunpack.c.h.b16 %v127
    %v256 = vunpack.c.l.b16 %v128
    %v257 = vunpack.c.h.b16 %v128
    %v258 = vunpack.c.l.b16 %v129
    %v259 = vunpack.c.h.b16 %v129
    %v260 = vunpack.c.l.b16 %v130
    %v261 = vunpack.c.h.b16 %v130
    %v262 = vunpack.c.l.b16 %v131
    %v263 = vunpack.c.h.b16 %v131
    %v264 = vunpack.c.l.b16 %v132
    %v265 = vunpack.c.h.b16 %v132
    %v266 = vunpack.c.l.b16 %v133
    %v267 = vunpack.c.h.b16 %v133
    %v268 = vunpack.c.l.b16 %v134
    %v269 = vunpack.c.h.b16 %v134
    %v270 = vunpack.c.l.b16 %v135
    %v271 = vunpack.c.h.b16 %v135
    %v272 = vunpack.c.l.b16 %v136
    %v273 = vunpack.c.h.b16 %v136
    %v274 = vunpack.c.l.b16 %v137
    %v275 = vunpack.c.h.b16 %v137
    %v276 = vunpack.c.l.b16 %v138
    %v277 = vunpack.c.h.b16 %v138
    %v278 = vunpack.c.l.b16 %v139
    %v279 = vunpack.c.h.b16 %v139
    %v280 = vunpack.c.l.b16 %v140
    %v281 = vunpack.c.h.b16 %v140
    %v282 = vunpack.c.l.b16 %v141
    %v283 = vunpack.c.h.b16 %v141
    %v284 = vpack.c.b16 %v224, %v220
    %v285 = vpack.c.b16 %v225, %v221
    %v286 = vpack.c.b16 %v226, %v222
    %v287 = vpack.c.b16 %v227, %v223
    %v288 = vpack.c.b16 %v232, %v228
    %v289 = vpack.c.b16 %v233, %v229
    %v290 = vpack.c.b16 %v234, %v230
    %v291 = vpack.c.b16 %v235, %v231
    %v292 = vpack.c.b16 %v240, %v236
    %v293 = vpack.c.b16 %v241, %v237
    %v294 = vpack.c.b16 %v242, %v238
    %v295 = vpack.c.b16 %v243, %v239
    %v296 = vpack.c.b16 %v248, %v244
    %v297 = vpack.c.b16 %v249, %v245
    %v298 = vpack.c.b16 %v250, %v246
    %v299 = vpack.c.b16 %v251, %v247
    %v300 = vpack.c.b16 %v256, %v252
    %v301 = vpack.c.b16 %v257, %v253
    %v302 = vpack.c.b16 %v258, %v254
    %v303 = vpack.c.b16 %v259, %v255
    %v304 = vpack.c.b16 %v264, %v260
    %v305 = vpack.c.b16 %v265, %v261
    %v306 = vpack.c.b16 %v266, %v262
    %v307 = vpack.c.b16 %v267, %v263
    %v308 = vpack.c.b16 %v272, %v268
    %v309 = vpack.c.b16 %v273, %v269
    %v310 = vpack.c.b16 %v274, %v270
    %v311 = vpack.c.b16 %v275, %v271
    %v312 = vpack.c.b16 %v280, %v276
    %v313 = vpack.c.b16 %v281, %v277
    %v314 = vpack.c.b16 %v282, %v278
    %v315 = vpack.c.b16 %v283, %v279
    %348 = vmatprep.subr.bf16.mxu0 %v285
    %349 = vmatpush1.bf16.msra.mxu0 %v284
    %350 = vmatprep.subr.bf16.mxu0 %v289
    %351 = vmatpush1.bf16.msra.mxu0 %v288
    %352 = vmatprep.subr.bf16.mxu0 %v293
    %353 = vmatpush1.bf16.msra.mxu0 %v292
    %354 = vmatprep.subr.bf16.mxu0 %v297
    %355 = vmatpush1.bf16.msra.mxu0 %v296
    %356 = vmatprep.subr.bf16.mxu0 %v301
    %357 = vmatpush1.bf16.msra.mxu0 %v300
    %358 = vmatprep.subr.bf16.mxu0 %v305
    %359 = vmatpush1.bf16.msra.mxu0 %v304
    %360 = vmatprep.subr.bf16.mxu0 %v309
    %361 = vmatpush1.bf16.msra.mxu0 %v308
    %362 = vmatprep.subr.bf16.mxu0 %v313
    %363 = vmatpush1.bf16.msra.mxu0 %v312
    %364 = vmatprep.subr.bf16.mxu0 0
    %365 = vmatpush1.bf16.msra.mxu0 0
    %366 = vmatprep.subr.bf16.mxu0 0
    %367 = vmatpush1.bf16.msra.mxu0 0
    %368 = vmatprep.subr.bf16.mxu0 0
    %369 = vmatpush1.bf16.msra.mxu0 0
    %370 = vmatprep.subr.bf16.mxu0 0
    %371 = vmatpush1.bf16.msra.mxu0 0
    %372 = vmatprep.subr.bf16.mxu0 0
    %373 = vmatpush1.bf16.msra.mxu0 0
    %374 = vmatprep.subr.bf16.mxu0 0
    %375 = vmatpush1.bf16.msra.mxu0 0
    %376 = vmatprep.subr.bf16.mxu0 0
    %377 = vmatpush1.bf16.msra.mxu0 0
    %378 = vmatprep.subr.bf16.mxu0 0
    %379 = vmatpush1.bf16.msra.mxu0 0
    %380 = vmatprep.mubr.bf16.mxu0 0
    %381 = vmatmul.mubr.bf16.gmra.mrb[0].mxu0 %v180
    %v382 = vpop.f32.mrb[0].mxu0
    %v383 = vadd.f32 %v147, %v382
    %v384 = vpop.f32.mrb[0].mxu0
    %v385 = vadd.f32 %v151, %v384
    %v386 = vpop.f32.mrb[0].mxu0
    %v387 = vadd.f32 %v147, %v386
    %v388 = vpop.f32.mrb[0].mxu0
    %v389 = vadd.f32 %v151, %v388
    %390 = vmatprep.mubr.bf16.mxu0 0
    %391 = vmatmul.mubr.bf16.gmra.mrb[0].mxu0 %v181
    %v392 = vpop.f32.mrb[0].mxu0
    %v393 = vadd.f32 %v147, %v392
    %v394 = vpop.f32.mrb[0].mxu0
    %v395 = vadd.f32 %v151, %v394
    %v396 = vpop.f32.mrb[0].mxu0
    %v397 = vadd.f32 %v147, %v396
    %v398 = vpop.f32.mrb[0].mxu0
    %v399 = vadd.f32 %v151, %v398
    %400 = vmatprep.mubr.bf16.mxu0 0
    %401 = vmatmul.mubr.bf16.gmra.mrb[0].mxu0 %v182
    %v402 = vpop.f32.mrb[0].mxu0
    %v403 = vadd.f32 %v147, %v402
    %v404 = vpop.f32.mrb[0].mxu0
    %v405 = vadd.f32 %v151, %v404
    %v406 = vpop.f32.mrb[0].mxu0
    %v407 = vadd.f32 %v147, %v406
    %v408 = vpop.f32.mrb[0].mxu0
    %v409 = vadd.f32 %v151, %v408
    %410 = vmatprep.mubr.bf16.mxu0 0
    %411 = vmatmul.mubr.bf16.gmra.mrb[0].mxu0 %v183
    %v412 = vpop.f32.mrb[0].mxu0
    %v413 = vadd.f32 %v147, %v412
    %v414 = vpop.f32.mrb[0].mxu0
    %v415 = vadd.f32 %v151, %v414
    %v416 = vpop.f32.mrb[0].mxu0
    %v417 = vadd.f32 %v147, %v416
    %v418 = vpop.f32.mrb[0].mxu0
    %v419 = vadd.f32 %v151, %v418
    %420 = vdwg.mxu0
    %421 = vmatprep.subr.bf16.mxu0 %v287
    %422 = vmatpush1.bf16.msra.mxu0 %v286
    %423 = vmatprep.subr.bf16.mxu0 %v291
    %424 = vmatpush1.bf16.msra.mxu0 %v290
    %425 = vmatprep.subr.bf16.mxu0 %v295
    %426 = vmatpush1.bf16.msra.mxu0 %v294
    %427 = vmatprep.subr.bf16.mxu0 %v299
    %428 = vmatpush1.bf16.msra.mxu0 %v298
    %429 = vmatprep.subr.bf16.mxu0 %v303
    %430 = vmatpush1.bf16.msra.mxu0 %v302
    %431 = vmatprep.subr.bf16.mxu0 %v307
    %432 = vmatpush1.bf16.msra.mxu0 %v306
    %433 = vmatprep.subr.bf16.mxu0 %v311
    %434 = vmatpush1.bf16.msra.mxu0 %v310
    %435 = vmatprep.subr.bf16.mxu0 %v315
    %436 = vmatpush1.bf16.msra.mxu0 %v314
    %437 = vmatprep.subr.bf16.mxu0 0
    %438 = vmatpush1.bf16.msra.mxu0 0
    %439 = vmatprep.subr.bf16.mxu0 0
    %440 = vmatpush1.bf16.msra.mxu0 0
    %441 = vmatprep.subr.bf16.mxu0 0
    %442 = vmatpush1.bf16.msra.mxu0 0
    %443 = vmatprep.subr.bf16.mxu0 0
    %444 = vmatpush1.bf16.msra.mxu0 0
    %445 = vmatprep.subr.bf16.mxu0 0
    %446 = vmatpush1.bf16.msra.mxu0 0
    %447 = vmatprep.subr.bf16.mxu0 0
    %448 = vmatpush1.bf16.msra.mxu0 0
    %449 = vmatprep.subr.bf16.mxu0 0
    %450 = vmatpush1.bf16.msra.mxu0 0
    %451 = vmatprep.subr.bf16.mxu0 0
    %452 = vmatpush1.bf16.msra.mxu0 0
    %453 = vmatprep.mubr.bf16.mxu0 0
    %454 = vmatmul.mubr.bf16.gmra.mrb[0].mxu0 %v180
    %v455 = vpop.f32.mrb[0].mxu0
    %v456 = vadd.f32 %v155, %v455
    %v457 = vpop.f32.mrb[0].mxu0
    %v458 = vadd.f32 %v159, %v457
    %v459 = vpop.f32.mrb[0].mxu0
    %v460 = vadd.f32 %v155, %v459
    %v461 = vpop.f32.mrb[0].mxu0
    %v462 = vadd.f32 %v159, %v461
    %463 = vmatprep.mubr.bf16.mxu0 0
    %464 = vmatmul.mubr.bf16.gmra.mrb[0].mxu0 %v181
    %v465 = vpop.f32.mrb[0].mxu0
    %v466 = vadd.f32 %v155, %v465
    %v467 = vpop.f32.mrb[0].mxu0
    %v468 = vadd.f32 %v159, %v467
    %v469 = vpop.f32.mrb[0].mxu0
    %v470 = vadd.f32 %v155, %v469
    %v471 = vpop.f32.mrb[0].mxu0
    %v472 = vadd.f32 %v159, %v471
    %473 = vmatprep.mubr.bf16.mxu0 0
    %474 = vmatmul.mubr.bf16.gmra.mrb[0].mxu0 %v182
    %v475 = vpop.f32.mrb[0].mxu0
    %v476 = vadd.f32 %v155, %v475
    %v477 = vpop.f32.mrb[0].mxu0
    %v478 = vadd.f32 %v159, %v477
    %v479 = vpop.f32.mrb[0].mxu0
    %v480 = vadd.f32 %v155, %v479
    %v481 = vpop.f32.mrb[0].mxu0
    %v482 = vadd.f32 %v159, %v481
    %483 = vmatprep.mubr.bf16.mxu0 0
    %484 = vmatmul.mubr.bf16.gmra.mrb[0].mxu0 %v183
    %v485 = vpop.f32.mrb[0].mxu0
    %v486 = vadd.f32 %v155, %v485
    %v487 = vpop.f32.mrb[0].mxu0
    %v488 = vadd.f32 %v159, %v487
    %v489 = vpop.f32.mrb[0].mxu0
    %v490 = vadd.f32 %v155, %v489
    %v491 = vpop.f32.mrb[0].mxu0
    %v492 = vadd.f32 %v159, %v491
    %493 = vdwg.mxu0
    %v494 = vmul.f32 %v383, %v383
    %v495 = vmul.f32 %v385, %v385
    %v496 = vmul.f32 %v456, %v456
    %v497 = vmul.f32 %v387, %v387
    %v498 = vmul.f32 %v389, %v389
    %v499 = vmul.f32 %v460, %v460
    %v500 = vmul.f32 %v393, %v393
    %v501 = vmul.f32 %v395, %v395
    %v502 = vmul.f32 %v466, %v466
    %v503 = vmul.f32 %v397, %v397
    %v504 = vmul.f32 %v399, %v399
    %v505 = vmul.f32 %v470, %v470
    %v506 = vmul.f32 %v403, %v403
    %v507 = vmul.f32 %v405, %v405
    %v508 = vmul.f32 %v476, %v476
    %v509 = vmul.f32 %v407, %v407
    %v510 = vmul.f32 %v409, %v409
    %v511 = vmul.f32 %v480, %v480
    %v512 = vmul.f32 %v413, %v413
    %v513 = vmul.f32 %v415, %v415
    %v514 = vmul.f32 %v486, %v486
    %v515 = vmul.f32 %v417, %v417
    %v516 = vmul.f32 %v419, %v419
    %v517 = vmul.f32 %v490, %v490
    %v518 = vpack.c.bf16 %v497, %v494
    %v519 = vpack.c.bf16 %v498, %v495
    %v520 = vpack.c.bf16 %v499, %v496
    %v521 = vpack.c.bf16 %v503, %v500
    %v522 = vpack.c.bf16 %v504, %v501
    %v523 = vpack.c.bf16 %v505, %v502
    %v524 = vpack.c.bf16 %v509, %v506
    %v525 = vpack.c.bf16 %v510, %v507
    %v526 = vpack.c.bf16 %v511, %v508
    %v527 = vpack.c.bf16 %v515, %v512
    %v528 = vpack.c.bf16 %v516, %v513
    %v529 = vpack.c.bf16 %v517, %v514
    %v530 = vld [vmem:[#allocation11] sm:$0xff]
    %v531 = vld [vmem:[#allocation11 + $0x8] sm:$0xf]
    %v532 = vld [vmem:[#allocation11 + $0xc] sm:$0xff]
    %v533 = vld [vmem:[#allocation11 + $0x14] sm:$0xf]
    %v534 = vld [vmem:[#allocation11 + $0x18] sm:$0xff]
    %v535 = vld [vmem:[#allocation11 + $0x20] sm:$0xf]
    %v536 = vld [vmem:[#allocation11 + $0x24] sm:$0xff]
    %v537 = vld [vmem:[#allocation11 + $0x2c] sm:$0xf]
    %v538 = vld [vmem:[#allocation11 + $0x30] sm:$0xff]
    %v539 = vld [vmem:[#allocation11 + $0x38] sm:$0xf]
    %v540 = vld [vmem:[#allocation11 + $0x3c] sm:$0xff]
    %v541 = vld [vmem:[#allocation11 + $0x44] sm:$0xf]
    %v542 = vld [vmem:[#allocation11 + $0x48] sm:$0xff]
    %v543 = vld [vmem:[#allocation11 + $0x50] sm:$0xf]
    %v544 = vld [vmem:[#allocation11 + $0x54] sm:$0xff]
    %v545 = vld [vmem:[#allocation11 + $0x5c] sm:$0xf]
    %v546 = vld [vmem:[#allocation11 + $0x60] sm:$0xff]
    %v547 = vld [vmem:[#allocation11 + $0x68] sm:$0xf]
    %v548 = vld [vmem:[#allocation11 + $0x6c] sm:$0xff]
    %v549 = vld [vmem:[#allocation11 + $0x74] sm:$0xf]
    %v550 = vld [vmem:[#allocation11 + $0x78] sm:$0xff]
    %v551 = vld [vmem:[#allocation11 + $0x80] sm:$0xf]
    %v552 = vld [vmem:[#allocation11 + $0x84] sm:$0xff]
    %v553 = vld [vmem:[#allocation11 + $0x8c] sm:$0xf]
    %v554 = vld [vmem:[#allocation11 + $0x90] sm:$0xff]
    %v555 = vld [vmem:[#allocation11 + $0x98] sm:$0xf]
    %v556 = vld [vmem:[#allocation11 + $0x9c] sm:$0xff]
    %v557 = vld [vmem:[#allocation11 + $0xa4] sm:$0xf]
    %v558 = vld [vmem:[#allocation11 + $0xa8] sm:$0xff]
    %v559 = vld [vmem:[#allocation11 + $0xb0] sm:$0xf]
    %v560 = vld [vmem:[#allocation11 + $0xb4] sm:$0xff]
    %v561 = vld [vmem:[#allocation11 + $0xbc] sm:$0xf]
    %v562 = vld [vmem:[#allocation11 + $0xc0] sm:$0xff]
    %v563 = vld [vmem:[#allocation11 + $0xc8] sm:$0xf]
    %v564 = vld [vmem:[#allocation11 + $0xcc] sm:$0xff]
    %v565 = vld [vmem:[#allocation11 + $0xd4] sm:$0xf]
    %v566 = vld [vmem:[#allocation11 + $0xd8] sm:$0xff]
    %v567 = vld [vmem:[#allocation11 + $0xe0] sm:$0xf]
    %v568 = vld [vmem:[#allocation11 + $0xe4] sm:$0xff]
    %v569 = vld [vmem:[#allocation11 + $0xec] sm:$0xf]
    %v570 = vld [vmem:[#allocation11 + $0xf0] sm:$0xff]
    %v571 = vld [vmem:[#allocation11 + $0xf8] sm:$0xf]
    %v572 = vld [vmem:[#allocation11 + $0xfc] sm:$0xff]
    %v573 = vld [vmem:[#allocation11 + $0x104] sm:$0xf]
    %v574 = vld [vmem:[#allocation11 + $0x108] sm:$0xff]
    %v575 = vld [vmem:[#allocation11 + $0x110] sm:$0xf]
    %v576 = vld [vmem:[#allocation11 + $0x114] sm:$0xff]
    %v577 = vld [vmem:[#allocation11 + $0x11c] sm:$0xf]
    %v578 = vld [vmem:[#allocation11 + $0x120] sm:$0xff]
    %v579 = vld [vmem:[#allocation11 + $0x128] sm:$0xf]
    %v580 = vld [vmem:[#allocation11 + $0x12c] sm:$0xff]
    %v581 = vld [vmem:[#allocation11 + $0x134] sm:$0xf]
    %v582 = vld [vmem:[#allocation11 + $0x138] sm:$0xff]
    %v583 = vld [vmem:[#allocation11 + $0x140] sm:$0xf]
    %v584 = vld [vmem:[#allocation11 + $0x144] sm:$0xff]
    %v585 = vld [vmem:[#allocation11 + $0x14c] sm:$0xf]
    %v586 = vld [vmem:[#allocation11 + $0x150] sm:$0xff]
    %v587 = vld [vmem:[#allocation11 + $0x158] sm:$0xf]
    %v588 = vld [vmem:[#allocation11 + $0x15c] sm:$0xff]
    %v589 = vld [vmem:[#allocation11 + $0x164] sm:$0xf]
    %v590 = vld [vmem:[#allocation11 + $0x168] sm:$0xff]
    %v591 = vld [vmem:[#allocation11 + $0x170] sm:$0xf]
    %v592 = vld [vmem:[#allocation11 + $0x174] sm:$0xff]
    %v593 = vld [vmem:[#allocation11 + $0x17c] sm:$0xf]
    %v594 = vld [vmem:[#allocation11 + $0x180] sm:$0xff]
    %v595 = vld [vmem:[#allocation11 + $0x188] sm:$0xf]
    %v596 = vld [vmem:[#allocation11 + $0x18c] sm:$0xff]
    %v597 = vld [vmem:[#allocation11 + $0x194] sm:$0xf]
    %v598 = vld [vmem:[#allocation11 + $0x198] sm:$0xff]
    %v599 = vld [vmem:[#allocation11 + $0x1a0] sm:$0xf]
    %v600 = vld [vmem:[#allocation11 + $0x1a4] sm:$0xff]
    %v601 = vld [vmem:[#allocation11 + $0x1ac] sm:$0xf]
    %v602 = vld [vmem:[#allocation11 + $0x1b0] sm:$0xff]
    %v603 = vld [vmem:[#allocation11 + $0x1b8] sm:$0xf]
    %v604 = vld [vmem:[#allocation11 + $0x1bc] sm:$0xff]
    %v605 = vld [vmem:[#allocation11 + $0x1c4] sm:$0xf]
    %v606 = vld [vmem:[#allocation11 + $0x1c8] sm:$0xff]
    %v607 = vld [vmem:[#allocation11 + $0x1d0] sm:$0xf]
    %v608 = vld [vmem:[#allocation11 + $0x1d4] sm:$0xff]
    %v609 = vld [vmem:[#allocation11 + $0x1dc] sm:$0xf]
    %v610 = vld [vmem:[#allocation11 + $0x1e0] sm:$0xff]
    %v611 = vld [vmem:[#allocation11 + $0x1e8] sm:$0xf]
    %v612 = vld [vmem:[#allocation11 + $0x1ec] sm:$0xff]
    %v613 = vld [vmem:[#allocation11 + $0x1f4] sm:$0xf]
    %v614 = vld [vmem:[#allocation11 + $0x1f8] sm:$0xff]
    %v615 = vld [vmem:[#allocation11 + $0x200] sm:$0xf]
    %v616 = vld [vmem:[#allocation11 + $0x204] sm:$0xff]
    %v617 = vld [vmem:[#allocation11 + $0x20c] sm:$0xf]
    %v618 = vld [vmem:[#allocation11 + $0x210] sm:$0xff]
    %v619 = vld [vmem:[#allocation11 + $0x218] sm:$0xf]
    %v620 = vld [vmem:[#allocation11 + $0x21c] sm:$0xff]
    %v621 = vld [vmem:[#allocation11 + $0x224] sm:$0xf]
    %v622 = vld [vmem:[#allocation11 + $0x228] sm:$0xff]
    %v623 = vld [vmem:[#allocation11 + $0x230] sm:$0xf]
    %v624 = vld [vmem:[#allocation11 + $0x234] sm:$0xff]
    %v625 = vld [vmem:[#allocation11 + $0x23c] sm:$0xf]
    %v722 = vunpack.c.l.b16 %v530
    %v723 = vunpack.c.h.b16 %v530
    %v724 = vunpack.c.l.b16 %v531
    %v725 = vunpack.c.l.b16 %v532
    %v726 = vunpack.c.h.b16 %v532
    %v727 = vunpack.c.l.b16 %v533
    %v728 = vunpack.c.l.b16 %v534
    %v729 = vunpack.c.h.b16 %v534
    %v730 = vunpack.c.l.b16 %v535
    %v731 = vunpack.c.l.b16 %v536
    %v732 = vunpack.c.h.b16 %v536
    %v733 = vunpack.c.l.b16 %v537
    %v734 = vunpack.c.l.b16 %v538
    %v735 = vunpack.c.h.b16 %v538
    %v736 = vunpack.c.l.b16 %v539
    %v737 = vunpack.c.l.b16 %v540
    %v738 = vunpack.c.h.b16 %v540
    %v739 = vunpack.c.l.b16 %v541
    %v740 = vunpack.c.l.b16 %v542
    %v741 = vunpack.c.h.b16 %v542
    %v742 = vunpack.c.l.b16 %v543
    %v743 = vunpack.c.l.b16 %v544
    %v744 = vunpack.c.h.b16 %v544
    %v745 = vunpack.c.l.b16 %v545
    %v746 = vunpack.c.l.b16 %v546
    %v747 = vunpack.c.h.b16 %v546
    %v748 = vunpack.c.l.b16 %v547
    %v749 = vunpack.c.l.b16 %v548
    %v750 = vunpack.c.h.b16 %v548
    %v751 = vunpack.c.l.b16 %v549
    %v752 = vunpack.c.l.b16 %v550
    %v753 = vunpack.c.h.b16 %v550
    %v754 = vunpack.c.l.b16 %v551
    %v755 = vunpack.c.l.b16 %v552
    %v756 = vunpack.c.h.b16 %v552
    %v757 = vunpack.c.l.b16 %v553
    %v758 = vunpack.c.l.b16 %v554
    %v759 = vunpack.c.h.b16 %v554
    %v760 = vunpack.c.l.b16 %v555
    %v761 = vunpack.c.l.b16 %v556
    %v762 = vunpack.c.h.b16 %v556
    %v763 = vunpack.c.l.b16 %v557
    %v764 = vunpack.c.l.b16 %v558
    %v765 = vunpack.c.h.b16 %v558
    %v766 = vunpack.c.l.b16 %v559
    %v767 = vunpack.c.l.b16 %v560
    %v768 = vunpack.c.h.b16 %v560
    %v769 = vunpack.c.l.b16 %v561
    %v770 = vunpack.c.l.b16 %v562
    %v771 = vunpack.c.h.b16 %v562
    %v772 = vunpack.c.l.b16 %v563
    %v773 = vunpack.c.l.b16 %v564
    %v774 = vunpack.c.h.b16 %v564
    %v775 = vunpack.c.l.b16 %v565
    %v776 = vunpack.c.l.b16 %v566
    %v777 = vunpack.c.h.b16 %v566
    %v778 = vunpack.c.l.b16 %v567
    %v779 = vunpack.c.l.b16 %v568
    %v780 = vunpack.c.h.b16 %v568
    %v781 = vunpack.c.l.b16 %v569
    %v782 = vunpack.c.l.b16 %v570
    %v783 = vunpack.c.h.b16 %v570
    %v784 = vunpack.c.l.b16 %v571
    %v785 = vunpack.c.l.b16 %v572
    %v786 = vunpack.c.h.b16 %v572
    %v787 = vunpack.c.l.b16 %v573
    %v788 = vunpack.c.l.b16 %v574
    %v789 = vunpack.c.h.b16 %v574
    %v790 = vunpack.c.l.b16 %v575
    %v791 = vunpack.c.l.b16 %v576
    %v792 = vunpack.c.h.b16 %v576
    %v793 = vunpack.c.l.b16 %v577
    %v794 = vunpack.c.l.b16 %v578
    %v795 = vunpack.c.h.b16 %v578
    %v796 = vunpack.c.l.b16 %v579
    %v797 = vunpack.c.l.b16 %v580
    %v798 = vunpack.c.h.b16 %v580
    %v799 = vunpack.c.l.b16 %v581
    %v800 = vunpack.c.l.b16 %v582
    %v801 = vunpack.c.h.b16 %v582
    %v802 = vunpack.c.l.b16 %v583
    %v803 = vunpack.c.l.b16 %v584
    %v804 = vunpack.c.h.b16 %v584
    %v805 = vunpack.c.l.b16 %v585
    %v806 = vunpack.c.l.b16 %v586
    %v807 = vunpack.c.h.b16 %v586
    %v808 = vunpack.c.l.b16 %v587
    %v809 = vunpack.c.l.b16 %v588
    %v810 = vunpack.c.h.b16 %v588
    %v811 = vunpack.c.l.b16 %v589
    %v812 = vunpack.c.l.b16 %v590
    %v813 = vunpack.c.h.b16 %v590
    %v814 = vunpack.c.l.b16 %v591
    %v815 = vunpack.c.l.b16 %v592
    %v816 = vunpack.c.h.b16 %v592
    %v817 = vunpack.c.l.b16 %v593
    %v818 = vunpack.c.l.b16 %v594
    %v819 = vunpack.c.h.b16 %v594
    %v820 = vunpack.c.l.b16 %v595
    %v821 = vunpack.c.l.b16 %v596
    %v822 = vunpack.c.h.b16 %v596
    %v823 = vunpack.c.l.b16 %v597
    %v824 = vunpack.c.l.b16 %v598
    %v825 = vunpack.c.h.b16 %v598
    %v826 = vunpack.c.l.b16 %v599
    %v827 = vunpack.c.l.b16 %v600
    %v828 = vunpack.c.h.b16 %v600
    %v829 = vunpack.c.l.b16 %v601
    %v830 = vunpack.c.l.b16 %v602
    %v831 = vunpack.c.h.b16 %v602
    %v832 = vunpack.c.l.b16 %v603
    %v833 = vunpack.c.l.b16 %v604
    %v834 = vunpack.c.h.b16 %v604
    %v835 = vunpack.c.l.b16 %v605
    %v836 = vunpack.c.l.b16 %v606
    %v837 = vunpack.c.h.b16 %v606
    %v838 = vunpack.c.l.b16 %v607
    %v839 = vunpack.c.l.b16 %v608
    %v840 = vunpack.c.h.b16 %v608
    %v841 = vunpack.c.l.b16 %v609
    %v842 = vunpack.c.l.b16 %v610
    %v843 = vunpack.c.h.b16 %v610
    %v844 = vunpack.c.l.b16 %v611
    %v845 = vunpack.c.l.b16 %v612
    %v846 = vunpack.c.h.b16 %v612
    %v847 = vunpack.c.l.b16 %v613
    %v848 = vunpack.c.l.b16 %v614
    %v849 = vunpack.c.h.b16 %v614
    %v850 = vunpack.c.l.b16 %v615
    %v851 = vunpack.c.l.b16 %v616
    %v852 = vunpack.c.h.b16 %v616
    %v853 = vunpack.c.l.b16 %v617
    %v854 = vunpack.c.l.b16 %v618
    %v855 = vunpack.c.h.b16 %v618
    %v856 = vunpack.c.l.b16 %v619
    %v857 = vunpack.c.l.b16 %v620
    %v858 = vunpack.c.h.b16 %v620
    %v859 = vunpack.c.l.b16 %v621
    %v860 = vunpack.c.l.b16 %v622
    %v861 = vunpack.c.h.b16 %v622
    %v862 = vunpack.c.l.b16 %v623
    %v863 = vunpack.c.l.b16 %v624
    %v864 = vunpack.c.h.b16 %v624
    %v865 = vunpack.c.l.b16 %v625
    %v866 = vpack.c.b16 %v725, %v722
    %v867 = vpack.c.b16 %v726, %v723
    %v868 = vpack.c.b16 %v727, %v724
    %v869 = vpack.c.b16 %v731, %v728
    %v870 = vpack.c.b16 %v732, %v729
    %v871 = vpack.c.b16 %v733, %v730
    %v872 = vpack.c.b16 %v737, %v734
    %v873 = vpack.c.b16 %v738, %v735
    %v874 = vpack.c.b16 %v739, %v736
    %v875 = vpack.c.b16 %v743, %v740
    %v876 = vpack.c.b16 %v744, %v741
    %v877 = vpack.c.b16 %v745, %v742
    %v878 = vpack.c.b16 %v749, %v746
    %v879 = vpack.c.b16 %v750, %v747
    %v880 = vpack.c.b16 %v751, %v748
    %v881 = vpack.c.b16 %v755, %v752
    %v882 = vpack.c.b16 %v756, %v753
    %v883 = vpack.c.b16 %v757, %v754
    %v884 = vpack.c.b16 %v761, %v758
    %v885 = vpack.c.b16 %v762, %v759
    %v886 = vpack.c.b16 %v763, %v760
    %v887 = vpack.c.b16 %v767, %v764
    %v888 = vpack.c.b16 %v768, %v765
    %v889 = vpack.c.b16 %v769, %v766
    %v890 = vpack.c.b16 %v773, %v770
    %v891 = vpack.c.b16 %v774, %v771
    %v892 = vpack.c.b16 %v775, %v772
    %v893 = vpack.c.b16 %v779, %v776
    %v894 = vpack.c.b16 %v780, %v777
    %v895 = vpack.c.b16 %v781, %v778
    %v896 = vpack.c.b16 %v785, %v782
    %v897 = vpack.c.b16 %v786, %v783
    %v898 = vpack.c.b16 %v787, %v784
    %v899 = vpack.c.b16 %v791, %v788
    %v900 = vpack.c.b16 %v792, %v789
    %v901 = vpack.c.b16 %v793, %v790
    %v902 = vpack.c.b16 %v797, %v794
    %v903 = vpack.c.b16 %v798, %v795
    %v904 = vpack.c.b16 %v799, %v796
    %v905 = vpack.c.b16 %v803, %v800
    %v906 = vpack.c.b16 %v804, %v801
    %v907 = vpack.c.b16 %v805, %v802
    %v908 = vpack.c.b16 %v809, %v806
    %v909 = vpack.c.b16 %v810, %v807
    %v910 = vpack.c.b16 %v811, %v808
    %v911 = vpack.c.b16 %v815, %v812
    %v912 = vpack.c.b16 %v816, %v813
    %v913 = vpack.c.b16 %v817, %v814
    %v914 = vpack.c.b16 %v821, %v818
    %v915 = vpack.c.b16 %v822, %v819
    %v916 = vpack.c.b16 %v823, %v820
    %v917 = vpack.c.b16 %v827, %v824
    %v918 = vpack.c.b16 %v828, %v825
    %v919 = vpack.c.b16 %v829, %v826
    %v920 = vpack.c.b16 %v833, %v830
    %v921 = vpack.c.b16 %v834, %v831
    %v922 = vpack.c.b16 %v835, %v832
    %v923 = vpack.c.b16 %v839, %v836
    %v924 = vpack.c.b16 %v840, %v837
    %v925 = vpack.c.b16 %v841, %v838
    %v926 = vpack.c.b16 %v845, %v842
    %v927 = vpack.c.b16 %v846, %v843
    %v928 = vpack.c.b16 %v847, %v844
    %v929 = vpack.c.b16 %v851, %v848
    %v930 = vpack.c.b16 %v852, %v849
    %v931 = vpack.c.b16 %v853, %v850
    %v932 = vpack.c.b16 %v857, %v854
    %v933 = vpack.c.b16 %v858, %v855
    %v934 = vpack.c.b16 %v859, %v856
    %v935 = vpack.c.b16 %v863, %v860
    %v936 = vpack.c.b16 %v864, %v861
    %v937 = vpack.c.b16 %v865, %v862
    %1010 = vmatprep.subr.bf16.mxu0 %v867
    %1011 = vmatpush1.bf16.msra.mxu0 %v866
    %1012 = vmatprep.subr.bf16.mxu0 %v870
    %1013 = vmatpush1.bf16.msra.mxu0 %v869
    %1014 = vmatprep.subr.bf16.mxu0 %v873
    %1015 = vmatpush1.bf16.msra.mxu0 %v872
    %1016 = vmatprep.subr.bf16.mxu0 %v876
    %1017 = vmatpush1.bf16.msra.mxu0 %v875
    %1018 = vmatprep.subr.bf16.mxu0 %v879
    %1019 = vmatpush1.bf16.msra.mxu0 %v878
    %1020 = vmatprep.subr.bf16.mxu0 %v882
    %1021 = vmatpush1.bf16.msra.mxu0 %v881
    %1022 = vmatprep.subr.bf16.mxu0 %v885
    %1023 = vmatpush1.bf16.msra.mxu0 %v884
    %1024 = vmatprep.subr.bf16.mxu0 %v888
    %1025 = vmatpush1.bf16.msra.mxu0 %v887
    %1026 = vmatprep.subr.bf16.mxu0 %v891
    %1027 = vmatpush1.bf16.msra.mxu0 %v890
    %1028 = vmatprep.subr.bf16.mxu0 %v894
    %1029 = vmatpush1.bf16.msra.mxu0 %v893
    %1030 = vmatprep.subr.bf16.mxu0 %v897
    %1031 = vmatpush1.bf16.msra.mxu0 %v896
    %1032 = vmatprep.subr.bf16.mxu0 %v900
    %1033 = vmatpush1.bf16.msra.mxu0 %v899
    %1034 = vmatprep.subr.bf16.mxu0 %v903
    %1035 = vmatpush1.bf16.msra.mxu0 %v902
    %1036 = vmatprep.subr.bf16.mxu0 %v906
    %1037 = vmatpush1.bf16.msra.mxu0 %v905
    %1038 = vmatprep.subr.bf16.mxu0 %v909
    %1039 = vmatpush1.bf16.msra.mxu0 %v908
    %1040 = vmatprep.subr.bf16.mxu0 %v912
    %1041 = vmatpush1.bf16.msra.mxu0 %v911
    %1042 = vmatprep.mubr.bf16.mxu0 %v519
    %1043 = vmatmul.mubr.bf16.gmra.mrb[0].mxu0 %v518
    %v1044 = vpop.f32.mrb[0].mxu0
    %v1045 = vadd.f32 0.0, %v1044
    %v1046 = vpop.f32.mrb[0].mxu0
    %v1047 = vadd.f32 0.0, %v1046
    %v1048 = vpop.f32.mrb[0].mxu0
    %v1049 = vadd.f32 0.0, %v1048
    %v1050 = vpop.f32.mrb[0].mxu0
    %v1051 = vadd.f32 0.0, %v1050
    %1052 = vmatprep.mubr.bf16.mxu0 %v522
    %1053 = vmatmul.mubr.bf16.gmra.mrb[0].mxu0 %v521
    %v1054 = vpop.f32.mrb[0].mxu0
    %v1055 = vadd.f32 0.0, %v1054
    %v1056 = vpop.f32.mrb[0].mxu0
    %v1057 = vadd.f32 0.0, %v1056
    %v1058 = vpop.f32.mrb[0].mxu0
    %v1059 = vadd.f32 0.0, %v1058
    %v1060 = vpop.f32.mrb[0].mxu0
    %v1061 = vadd.f32 0.0, %v1060
    %1062 = vmatprep.mubr.bf16.mxu0 %v525
    %1063 = vmatmul.mubr.bf16.gmra.mrb[0].mxu0 %v524
    %v1064 = vpop.f32.mrb[0].mxu0
    %v1065 = vadd.f32 0.0, %v1064
    %v1066 = vpop.f32.mrb[0].mxu0
    %v1067 = vadd.f32 0.0, %v1066
    %v1068 = vpop.f32.mrb[0].mxu0
    %v1069 = vadd.f32 0.0, %v1068
    %v1070 = vpop.f32.mrb[0].mxu0
    %v1071 = vadd.f32 0.0, %v1070
    %1072 = vmatprep.mubr.bf16.mxu0 %v528
    %1073 = vmatmul.mubr.bf16.gmra.mrb[0].mxu0 %v527
    %v1074 = vpop.f32.mrb[0].mxu0
    %v1075 = vadd.f32 0.0, %v1074
    %v1076 = vpop.f32.mrb[0].mxu0
    %v1077 = vadd.f32 0.0, %v1076
    %v1078 = vpop.f32.mrb[0].mxu0
    %v1079 = vadd.f32 0.0, %v1078
    %v1080 = vpop.f32.mrb[0].mxu0
    %v1081 = vadd.f32 0.0, %v1080
    %1082 = vdwg.mxu0
    %1083 = vmatprep.subr.bf16.mxu0 %v915
    %1084 = vmatpush1.bf16.msra.mxu0 %v914
    %1085 = vmatprep.subr.bf16.mxu0 %v918
    %1086 = vmatpush1.bf16.msra.mxu0 %v917
    %1087 = vmatprep.subr.bf16.mxu0 %v921
    %1088 = vmatpush1.bf16.msra.mxu0 %v920
    %1089 = vmatprep.subr.bf16.mxu0 %v924
    %1090 = vmatpush1.bf16.msra.mxu0 %v923
    %1091 = vmatprep.subr.bf16.mxu0 %v927
    %1092 = vmatpush1.bf16.msra.mxu0 %v926
    %1093 = vmatprep.subr.bf16.mxu0 %v930
    %1094 = vmatpush1.bf16.msra.mxu0 %v929
    %1095 = vmatprep.subr.bf16.mxu0 %v933
    %1096 = vmatpush1.bf16.msra.mxu0 %v932
    %1097 = vmatprep.subr.bf16.mxu0 %v936
    %1098 = vmatpush1.bf16.msra.mxu0 %v935
    %1099 = vmatprep.subr.bf16.mxu0 0
    %1100 = vmatpush1.bf16.msra.mxu0 0
    %1101 = vmatprep.subr.bf16.mxu0 0
    %1102 = vmatpush1.bf16.msra.mxu0 0
    %1103 = vmatprep.subr.bf16.mxu0 0
    %1104 = vmatpush1.bf16.msra.mxu0 0
    %1105 = vmatprep.subr.bf16.mxu0 0
    %1106 = vmatpush1.bf16.msra.mxu0 0
    %1107 = vmatprep.subr.bf16.mxu0 0
    %1108 = vmatpush1.bf16.msra.mxu0 0
    %1109 = vmatprep.subr.bf16.mxu0 0
    %1110 = vmatpush1.bf16.msra.mxu0 0
    %1111 = vmatprep.subr.bf16.mxu0 0
    %1112 = vmatpush1.bf16.msra.mxu0 0
    %1113 = vmatprep.subr.bf16.mxu0 0
    %1114 = vmatpush1.bf16.msra.mxu0 0
    %1115 = vmatprep.mubr.bf16.mxu0 0
    %1116 = vmatmul.mubr.bf16.gmra.mrb[0].mxu0 %v520
    %v1117 = vpop.f32.mrb[0].mxu0
    %v1118 = vadd.f32 %v1045, %v1117
    %v1119 = vpop.f32.mrb[0].mxu0
    %v1120 = vadd.f32 %v1047, %v1119
    %v1121 = vpop.f32.mrb[0].mxu0
    %v1122 = vadd.f32 %v1049, %v1121
    %v1123 = vpop.f32.mrb[0].mxu0
    %v1124 = vadd.f32 %v1051, %v1123
    %1125 = vmatprep.mubr.bf16.mxu0 0
    %1126 = vmatmul.mubr.bf16.gmra.mrb[0].mxu0 %v523
    %v1127 = vpop.f32.mrb[0].mxu0
    %v1128 = vadd.f32 %v1055, %v1127
    %v1129 = vpop.f32.mrb[0].mxu0
    %v1130 = vadd.f32 %v1057, %v1129
    %v1131 = vpop.f32.mrb[0].mxu0
    %v1132 = vadd.f32 %v1059, %v1131
    %v1133 = vpop.f32.mrb[0].mxu0
    %v1134 = vadd.f32 %v1061, %v1133
    %1135 = vmatprep.mubr.bf16.mxu0 0
    %1136 = vmatmul.mubr.bf16.gmra.mrb[0].mxu0 %v526
    %v1137 = vpop.f32.mrb[0].mxu0
    %v1138 = vadd.f32 %v1065, %v1137
    %v1139 = vpop.f32.mrb[0].mxu0
    %v1140 = vadd.f32 %v1067, %v1139
    %v1141 = vpop.f32.mrb[0].mxu0
    %v1142 = vadd.f32 %v1069, %v1141
    %v1143 = vpop.f32.mrb[0].mxu0
    %v1144 = vadd.f32 %v1071, %v1143
    %1145 = vmatprep.mubr.bf16.mxu0 0
    %1146 = vmatmul.mubr.bf16.gmra.mrb[0].mxu0 %v529
    %v1147 = vpop.f32.mrb[0].mxu0
    %v1148 = vadd.f32 %v1075, %v1147
    %v1149 = vpop.f32.mrb[0].mxu0
    %v1150 = vadd.f32 %v1077, %v1149
    %v1151 = vpop.f32.mrb[0].mxu0
    %v1152 = vadd.f32 %v1079, %v1151
    %v1153 = vpop.f32.mrb[0].mxu0
    %v1154 = vadd.f32 %v1081, %v1153
    %1155 = vdwg.mxu0
    %1156 = vmatprep.subr.bf16.mxu0 0
    %1157 = vmatpush1.bf16.msra.mxu0 %v868
    %1158 = vmatprep.subr.bf16.mxu0 0
    %1159 = vmatpush1.bf16.msra.mxu0 %v871
    %1160 = vmatprep.subr.bf16.mxu0 0
    %1161 = vmatpush1.bf16.msra.mxu0 %v874
    %1162 = vmatprep.subr.bf16.mxu0 0
    %1163 = vmatpush1.bf16.msra.mxu0 %v877
    %1164 = vmatprep.subr.bf16.mxu0 0
    %1165 = vmatpush1.bf16.msra.mxu0 %v880
    %1166 = vmatprep.subr.bf16.mxu0 0
    %1167 = vmatpush1.bf16.msra.mxu0 %v883
    %1168 = vmatprep.subr.bf16.mxu0 0
    %1169 = vmatpush1.bf16.msra.mxu0 %v886
    %1170 = vmatprep.subr.bf16.mxu0 0
    %1171 = vmatpush1.bf16.msra.mxu0 %v889
    %1172 = vmatprep.subr.bf16.mxu0 0
    %1173 = vmatpush1.bf16.msra.mxu0 %v892
    %1174 = vmatprep.subr.bf16.mxu0 0
    %1175 = vmatpush1.bf16.msra.mxu0 %v895
    %1176 = vmatprep.subr.bf16.mxu0 0
    %1177 = vmatpush1.bf16.msra.mxu0 %v898
    %1178 = vmatprep.subr.bf16.mxu0 0
    %1179 = vmatpush1.bf16.msra.mxu0 %v901
    %1180 = vmatprep.subr.bf16.mxu0 0
    %1181 = vmatpush1.bf16.msra.mxu0 %v904
    %1182 = vmatprep.subr.bf16.mxu0 0
    %1183 = vmatpush1.bf16.msra.mxu0 %v907
    %1184 = vmatprep.subr.bf16.mxu0 0
    %1185 = vmatpush1.bf16.msra.mxu0 %v910
    %1186 = vmatprep.subr.bf16.mxu0 0
    %1187 = vmatpush1.bf16.msra.mxu0 %v913
    %1188 = vmatprep.mubr.bf16.mxu0 %v519
    %1189 = vmatmul.mubr.bf16.gmra.mrb[0].mxu0 %v518
    %v1190 = vpop.f32.mrb[0].mxu0
    %v1191 = vadd.f32 0.0, %v1190
    %v1192 = vpop.f32.mrb[0].mxu0
    %v1193 = vpop.f32.mrb[0].mxu0
    %v1194 = vadd.f32 0.0, %v1193
    %v1195 = vpop.f32.mrb[0].mxu0
    %1196 = vmatprep.mubr.bf16.mxu0 %v522
    %1197 = vmatmul.mubr.bf16.gmra.mrb[0].mxu0 %v521
    %v1198 = vpop.f32.mrb[0].mxu0
    %v1199 = vadd.f32 0.0, %v1198
    %v1200 = vpop.f32.mrb[0].mxu0
    %v1201 = vpop.f32.mrb[0].mxu0
    %v1202 = vadd.f32 0.0, %v1201
    %v1203 = vpop.f32.mrb[0].mxu0
    %1204 = vmatprep.mubr.bf16.mxu0 %v525
    %1205 = vmatmul.mubr.bf16.gmra.mrb[0].mxu0 %v524
    %v1206 = vpop.f32.mrb[0].mxu0
    %v1207 = vadd.f32 0.0, %v1206
    %v1208 = vpop.f32.mrb[0].mxu0
    %v1209 = vpop.f32.mrb[0].mxu0
    %v1210 = vadd.f32 0.0, %v1209
    %v1211 = vpop.f32.mrb[0].mxu0
    %1212 = vmatprep.mubr.bf16.mxu0 %v528
    %1213 = vmatmul.mubr.bf16.gmra.mrb[0].mxu0 %v527
    %v1214 = vpop.f32.mrb[0].mxu0
    %v1215 = vadd.f32 0.0, %v1214
    %v1216 = vpop.f32.mrb[0].mxu0
    %v1217 = vpop.f32.mrb[0].mxu0
    %v1218 = vadd.f32 0.0, %v1217
    %v1219 = vpop.f32.mrb[0].mxu0
    %1220 = vdwg.mxu0
    %1221 = vmatprep.subr.bf16.mxu0 0
    %1222 = vmatpush1.bf16.msra.mxu0 %v916
    %1223 = vmatprep.subr.bf16.mxu0 0
    %1224 = vmatpush1.bf16.msra.mxu0 %v919
    %1225 = vmatprep.subr.bf16.mxu0 0
    %1226 = vmatpush1.bf16.msra.mxu0 %v922
    %1227 = vmatprep.subr.bf16.mxu0 0
    %1228 = vmatpush1.bf16.msra.mxu0 %v925
    %1229 = vmatprep.subr.bf16.mxu0 0
    %1230 = vmatpush1.bf16.msra.mxu0 %v928
    %1231 = vmatprep.subr.bf16.mxu0 0
    %1232 = vmatpush1.bf16.msra.mxu0 %v931
    %1233 = vmatprep.subr.bf16.mxu0 0
    %1234 = vmatpush1.bf16.msra.mxu0 %v934
    %1235 = vmatprep.subr.bf16.mxu0 0
    %1236 = vmatpush1.bf16.msra.mxu0 %v937
    %1237 = vmatprep.subr.bf16.mxu0 0
    %1238 = vmatpush1.bf16.msra.mxu0 0
    %1239 = vmatprep.subr.bf16.mxu0 0
    %1240 = vmatpush1.bf16.msra.mxu0 0
    %1241 = vmatprep.subr.bf16.mxu0 0
    %1242 = vmatpush1.bf16.msra.mxu0 0
    %1243 = vmatprep.subr.bf16.mxu0 0
    %1244 = vmatpush1.bf16.msra.mxu0 0
    %1245 = vmatprep.subr.bf16.mxu0 0
    %1246 = vmatpush1.bf16.msra.mxu0 0
    %1247 = vmatprep.subr.bf16.mxu0 0
    %1248 = vmatpush1.bf16.msra.mxu0 0
    %1249 = vmatprep.subr.bf16.mxu0 0
    %1250 = vmatpush1.bf16.msra.mxu0 0
    %1251 = vmatprep.subr.bf16.mxu0 0
    %1252 = vmatpush1.bf16.msra.mxu0 0
    %1253 = vmatprep.mubr.bf16.mxu0 0
    %1254 = vmatmul.mubr.bf16.gmra.mrb[0].mxu0 %v520
    %v1255 = vpop.f32.mrb[0].mxu0
    %v1256 = vadd.f32 %v1191, %v1255
    %v1257 = vpop.f32.mrb[0].mxu0
    %v1258 = vpop.f32.mrb[0].mxu0
    %v1259 = vadd.f32 %v1194, %v1258
    %v1260 = vpop.f32.mrb[0].mxu0
    %1261 = vmatprep.mubr.bf16.mxu0 0
    %1262 = vmatmul.mubr.bf16.gmra.mrb[0].mxu0 %v523
    %v1263 = vpop.f32.mrb[0].mxu0
    %v1264 = vadd.f32 %v1199, %v1263
    %v1265 = vpop.f32.mrb[0].mxu0
    %v1266 = vpop.f32.mrb[0].mxu0
    %v1267 = vadd.f32 %v1202, %v1266
    %v1268 = vpop.f32.mrb[0].mxu0
    %1269 = vmatprep.mubr.bf16.mxu0 0
    %1270 = vmatmul.mubr.bf16.gmra.mrb[0].mxu0 %v526
    %v1271 = vpop.f32.mrb[0].mxu0
    %v1272 = vadd.f32 %v1207, %v1271
    %v1273 = vpop.f32.mrb[0].mxu0
    %v1274 = vpop.f32.mrb[0].mxu0
    %v1275 = vadd.f32 %v1210, %v1274
    %v1276 = vpop.f32.mrb[0].mxu0
    %1277 = vmatprep.mubr.bf16.mxu0 0
    %1278 = vmatmul.mubr.bf16.gmra.mrb[0].mxu0 %v529
    %v1279 = vpop.f32.mrb[0].mxu0
    %v1280 = vadd.f32 %v1215, %v1279
    %v1281 = vpop.f32.mrb[0].mxu0
    %v1282 = vpop.f32.mrb[0].mxu0
    %v1283 = vadd.f32 %v1218, %v1282
    %v1284 = vpop.f32.mrb[0].mxu0
    %1285 = vdwg.mxu0
    %v1286 = vmax.f32 %v1118, 1e-24
    %v1287 = vmax.f32 %v1120, 1e-24
    %v1288 = vmax.f32 %v1256, 1e-24
    %v1289 = vmax.f32 %v1122, 1e-24
    %v1290 = vmax.f32 %v1124, 1e-24
    %v1291 = vmax.f32 %v1259, 1e-24
    %v1292 = vmax.f32 %v1128, 1e-24
    %v1293 = vmax.f32 %v1130, 1e-24
    %v1294 = vmax.f32 %v1264, 1e-24
    %v1295 = vmax.f32 %v1132, 1e-24
    %v1296 = vmax.f32 %v1134, 1e-24
    %v1297 = vmax.f32 %v1267, 1e-24
    %v1298 = vmax.f32 %v1138, 1e-24
    %v1299 = vmax.f32 %v1140, 1e-24
    %v1300 = vmax.f32 %v1272, 1e-24
    %v1301 = vmax.f32 %v1142, 1e-24
    %v1302 = vmax.f32 %v1144, 1e-24
    %v1303 = vmax.f32 %v1275, 1e-24
    %v1304 = vmax.f32 %v1148, 1e-24
    %v1305 = vmax.f32 %v1150, 1e-24
    %v1306 = vmax.f32 %v1280, 1e-24
    %v1307 = vmax.f32 %v1152, 1e-24
    %v1308 = vmax.f32 %v1154, 1e-24
    %v1309 = vmax.f32 %v1283, 1e-24
    %v1310 = vrsqrt.pop %v1286
    %v1311 = vrsqrt.pop %v1287
    %v1312 = vrsqrt.pop %v1288
    %v1313 = vrsqrt.pop %v1289
    %v1314 = vrsqrt.pop %v1290
    %v1315 = vrsqrt.pop %v1291
    %v1316 = vrsqrt.pop %v1292
    %v1317 = vrsqrt.pop %v1293
    %v1318 = vrsqrt.pop %v1294
    %v1319 = vrsqrt.pop %v1295
    %v1320 = vrsqrt.pop %v1296
    %v1321 = vrsqrt.pop %v1297
    %v1322 = vrsqrt.pop %v1298
    %v1323 = vrsqrt.pop %v1299
    %v1324 = vrsqrt.pop %v1300
    %v1325 = vrsqrt.pop %v1301
    %v1326 = vrsqrt.pop %v1302
    %v1327 = vrsqrt.pop %v1303
    %v1328 = vrsqrt.pop %v1304
    %v1329 = vrsqrt.pop %v1305
    %v1330 = vrsqrt.pop %v1306
    %v1331 = vrsqrt.pop %v1307
    %v1332 = vrsqrt.pop %v1308
    %v1333 = vrsqrt.pop %v1309
    %v1334 = vmul.f32 %v383, %v1310
    %v1335 = vmul.f32 %v385, %v1311
    %v1336 = vmul.f32 %v456, %v1312
    %v1337 = vmul.f32 %v387, %v1313
    %v1338 = vmul.f32 %v389, %v1314
    %v1339 = vmul.f32 %v460, %v1315
    %v1340 = vmul.f32 %v393, %v1316
    %v1341 = vmul.f32 %v395, %v1317
    %v1342 = vmul.f32 %v466, %v1318
    %v1343 = vmul.f32 %v397, %v1319
    %v1344 = vmul.f32 %v399, %v1320
    %v1345 = vmul.f32 %v470, %v1321
    %v1346 = vmul.f32 %v403, %v1322
    %v1347 = vmul.f32 %v405, %v1323
    %v1348 = vmul.f32 %v476, %v1324
    %v1349 = vmul.f32 %v407, %v1325
    %v1350 = vmul.f32 %v409, %v1326
    %v1351 = vmul.f32 %v480, %v1327
    %v1352 = vmul.f32 %v413, %v1328
    %v1353 = vmul.f32 %v415, %v1329
    %v1354 = vmul.f32 %v486, %v1330
    %v1355 = vmul.f32 %v417, %v1331
    %v1356 = vmul.f32 %v419, %v1332
    %v1357 = vmul.f32 %v490, %v1333
    %v1358 = vpack.c.bf16 %v1337, %v1334
    %v1359 = vpack.c.bf16 %v1343, %v1340
    %v1360 = vpack.c.bf16 %v1349, %v1346
    %v1361 = vpack.c.bf16 %v1355, %v1352
    %1362 = vst [vmem:[#allocation2] sm:$0xff] %v1358
    %1363 = vst [vmem:[#allocation2 + $0x8] sm:$0xff] %v1359
    %1364 = vst [vmem:[#allocation2 + $0x10] sm:$0xff] %v1360
    %1365 = vst [vmem:[#allocation2 + $0x18] sm:$0xff] %v1361
    %v1366 = vpack.c.bf16 %v1338, %v1335
    %v1367 = vpack.c.bf16 %v1344, %v1341
    %v1368 = vpack.c.bf16 %v1350, %v1347
    %v1369 = vpack.c.bf16 %v1356, %v1353
    %1370 = vst [vmem:[#allocation3] sm:$0xff] %v1366
    %1371 = vst [vmem:[#allocation3 + $0x8] sm:$0xff] %v1367
    %1372 = vst [vmem:[#allocation3 + $0x10] sm:$0xff] %v1368
    %1373 = vst [vmem:[#allocation3 + $0x18] sm:$0xff] %v1369
    %v1374 = vpack.c.bf16 %v1339, %v1336
    %v1375 = vpack.c.bf16 %v1345, %v1342
    %v1376 = vpack.c.bf16 %v1351, %v1348
    %v1377 = vpack.c.bf16 %v1357, %v1354
    %1378 = vst [vmem:[#allocation4] sm:$0xff] %v1374
    %1379 = vst [vmem:[#allocation4 + $0x8] sm:$0xff] %v1375
    %1380 = vst [vmem:[#allocation4 + $0x10] sm:$0xff] %v1376
    %1381 = vst [vmem:[#allocation4 + $0x18] sm:$0xff] %v1377
    %v1382 = vld [vmem:[#allocation12] sm:$0xf]
    %v1383 = vld [vmem:[#allocation12 + $0x4] sm:$0xf]
    %v1384 = vld [vmem:[#allocation12 + $0x8] sm:$0xf]
    %v1385 = vld [vmem:[#allocation12 + $0xc] sm:$0xf]
    %v1386 = vld [vmem:[#allocation12 + $0x10] sm:$0xf]
    %v1387 = vld [vmem:[#allocation12 + $0x14] sm:$0xf]
    %v1388 = vld [vmem:[#allocation12 + $0x18] sm:$0xf]
    %v1389 = vld [vmem:[#allocation12 + $0x1c] sm:$0xf]
    %v1390 = vld [vmem:[#allocation12 + $0x20] sm:$0xf]
    %v1391 = vld [vmem:[#allocation12 + $0x24] sm:$0xf]
    %v1392 = vld [vmem:[#allocation12 + $0x28] sm:$0xf]
    %v1393 = vld [vmem:[#allocation12 + $0x2c] sm:$0xf]
    %v1394 = vld [vmem:[#allocation12 + $0x30] sm:$0xf]
    %v1395 = vld [vmem:[#allocation12 + $0x34] sm:$0xf]
    %v1396 = vld [vmem:[#allocation12 + $0x38] sm:$0xf]
    %v1397 = vld [vmem:[#allocation12 + $0x3c] sm:$0xf]
    %v1398 = vld [vmem:[#allocation2] sm:$0xff]
    %v1399 = vld [vmem:[#allocation3] sm:$0xff]
    %v1400 = vld [vmem:[#allocation4] sm:$0xff]
    %v1417 = vunpack.c.l.b16 %v1382
    %v1418 = vunpack.c.l.b16 %v1383
    %v1419 = vunpack.c.l.b16 %v1384
    %v1420 = vunpack.c.l.b16 %v1385
    %v1421 = vunpack.c.l.b16 %v1386
    %v1422 = vunpack.c.l.b16 %v1387
    %v1423 = vunpack.c.l.b16 %v1388
    %v1424 = vunpack.c.l.b16 %v1389
    %v1425 = vunpack.c.l.b16 %v1390
    %v1426 = vunpack.c.l.b16 %v1391
    %v1427 = vunpack.c.l.b16 %v1392
    %v1428 = vunpack.c.l.b16 %v1393
    %v1429 = vunpack.c.l.b16 %v1394
    %v1430 = vunpack.c.l.b16 %v1395
    %v1431 = vunpack.c.l.b16 %v1396
    %v1432 = vunpack.c.l.b16 %v1397
    %v1433 = vpack.c.b16 %v1418, %v1417
    %v1434 = vpack.c.b16 %v1420, %v1419
    %v1435 = vpack.c.b16 %v1422, %v1421
    %v1436 = vpack.c.b16 %v1424, %v1423
    %v1437 = vpack.c.b16 %v1426, %v1425
    %v1438 = vpack.c.b16 %v1428, %v1427
    %v1439 = vpack.c.b16 %v1430, %v1429
    %v1440 = vpack.c.b16 %v1432, %v1431
    %v1449 = vmul.bf16 %v1399, %v1433
    %v1450 = vmul.bf16 %v1399, %v1434
    %v1451 = vmul.bf16 %v1399, %v1435
    %v1452 = vmul.bf16 %v1399, %v1436
    %v1453 = vmul.bf16 %v1399, %v1437
    %v1454 = vmul.bf16 %v1399, %v1438
    %v1455 = vmul.bf16 %v1399, %v1439
    %v1456 = vmul.bf16 %v1399, %v1440
    %v1457 = vmul.bf16 %v1400, %v1433
    %v1458 = vmul.bf16 %v1400, %v1434
    %v1459 = vmul.bf16 %v1400, %v1435
    %v1460 = vmul.bf16 %v1400, %v1436
    %v1461 = vmul.bf16 %v1400, %v1437
    %v1462 = vmul.bf16 %v1400, %v1438
    %v1463 = vmul.bf16 %v1400, %v1439
    %v1464 = vmul.bf16 %v1400, %v1440
    %1465 = vmatprep.subr.bf16.mxu0 0
    %1466 = vmatpush1.bf16.xpose.msra.mxu0 %v1449
    %1467 = vmatprep.subr.bf16.mxu0 0
    %1468 = vmatpush1.bf16.xpose.msra.mxu0 %v1450
    %1469 = vmatprep.subr.bf16.mxu0 0
    %1470 = vmatpush1.bf16.xpose.msra.mxu0 %v1451
    %1471 = vmatprep.subr.bf16.mxu0 0
    %1472 = vmatpush1.bf16.xpose.msra.mxu0 %v1452
    %1473 = vmatprep.subr.bf16.mxu0 0
    %1474 = vmatpush1.bf16.xpose.msra.mxu0 %v1453
    %1475 = vmatprep.subr.bf16.mxu0 0
    %1476 = vmatpush1.bf16.xpose.msra.mxu0 %v1454
    %1477 = vmatprep.subr.bf16.mxu0 0
    %1478 = vmatpush1.bf16.xpose.msra.mxu0 %v1455
    %1479 = vmatprep.subr.bf16.mxu0 0
    %1480 = vmatpush1.bf16.xpose.msra.mxu0 %v1456
    %1481 = vmatprep.subr.bf16.mxu0 0
    %1482 = vmatpush1.bf16.xpose.msra.mxu0 0
    %1483 = vmatprep.subr.bf16.mxu0 0
    %1484 = vmatpush1.bf16.xpose.msra.mxu0 0
    %1485 = vmatprep.subr.bf16.mxu0 0
    %1486 = vmatpush1.bf16.xpose.msra.mxu0 0
    %1487 = vmatprep.subr.bf16.mxu0 0
    %1488 = vmatpush1.bf16.xpose.msra.mxu0 0
    %1489 = vmatprep.subr.bf16.mxu0 0
    %1490 = vmatpush1.bf16.xpose.msra.mxu0 0
    %1491 = vmatprep.subr.bf16.mxu0 0
    %1492 = vmatpush1.bf16.xpose.msra.mxu0 0
    %1493 = vmatprep.subr.bf16.mxu0 0
    %1494 = vmatpush1.bf16.xpose.msra.mxu0 0
    %1495 = vmatprep.subr.bf16.mxu0 0
    %1496 = vmatpush1.bf16.xpose.msra.mxu0 0
    %1497 = vmatprep.mubr.bf16.mxu0 0
    %1498 = vmatmul.mubr.bf16.gmra.mrb[0].mxu0 %v1398
    %v1499 = vpop.f32.mrb[0].mxu0
    %v1500 = vadd.f32 0.0, %v1499
    %v1501 = vpop.f32.mrb[0].mxu0
    %v1502 = vpop.f32.mrb[0].mxu0
    %v1503 = vadd.f32 0.0, %v1502
    %v1504 = vpop.f32.mrb[0].mxu0
    %1505 = vdwg.mxu0
    %v1506 = vmul.f32 %v1500, 0.25
    %v1507 = vmul.f32 %v1503, 0.25
    %v1508 = vmul.f32 %v1506, 1.442695
    %v1509 = vpow.pop %v1508
    %v1510 = vmul.f32 %v1507, 1.442695
    %v1511 = vpow.pop %v1510
    %v1512 = vpack.c.bf16 %v1511, %v1509
    %1513 = vmatprep.subr.bf16.mxu0 %v1433
    %1514 = vmatpush1.bf16.msra.mxu0 %v1457
    %1515 = vmatprep.subr.bf16.mxu0 %v1434
    %1516 = vmatpush1.bf16.msra.mxu0 %v1458
    %1517 = vmatprep.subr.bf16.mxu0 %v1435
    %1518 = vmatpush1.bf16.msra.mxu0 %v1459
    %1519 = vmatprep.subr.bf16.mxu0 %v1436
    %1520 = vmatpush1.bf16.msra.mxu0 %v1460
    %1521 = vmatprep.subr.bf16.mxu0 %v1437
    %1522 = vmatpush1.bf16.msra.mxu0 %v1461
    %1523 = vmatprep.subr.bf16.mxu0 %v1438
    %1524 = vmatpush1.bf16.msra.mxu0 %v1462
    %1525 = vmatprep.subr.bf16.mxu0 %v1439
    %1526 = vmatpush1.bf16.msra.mxu0 %v1463
    %1527 = vmatprep.subr.bf16.mxu0 %v1440
    %1528 = vmatpush1.bf16.msra.mxu0 %v1464
    %1529 = vmatprep.subr.bf16.mxu0 0
    %1530 = vmatpush1.bf16.msra.mxu0 0
    %1531 = vmatprep.subr.bf16.mxu0 0
    %1532 = vmatpush1.bf16.msra.mxu0 0
    %1533 = vmatprep.subr.bf16.mxu0 0
    %1534 = vmatpush1.bf16.msra.mxu0 0
    %1535 = vmatprep.subr.bf16.mxu0 0
    %1536 = vmatpush1.bf16.msra.mxu0 0
    %1537 = vmatprep.subr.bf16.mxu0 0
    %1538 = vmatpush1.bf16.msra.mxu0 0
    %1539 = vmatprep.subr.bf16.mxu0 0
    %1540 = vmatpush1.bf16.msra.mxu0 0
    %1541 = vmatprep.subr.bf16.mxu0 0
    %1542 = vmatpush1.bf16.msra.mxu0 0
    %1543 = vmatprep.subr.bf16.mxu0 0
    %1544 = vmatpush1.bf16.msra.mxu0 0
    %1545 = vmatprep.mubr.bf16.mxu0 0
    %1546 = vmatmul.mubr.bf16.gmra.mrb[0].mxu0 %v1512
    %v1547 = vpop.f32.mrb[0].mxu0
    %v1548 = vadd.f32 0.0, %v1547
    %v1549 = vpop.f32.mrb[0].mxu0
    %v1550 = vadd.f32 0.0, %v1549
    %v1551 = vpop.f32.mrb[0].mxu0
    %v1552 = vadd.f32 0.0, %v1551
    %v1553 = vpop.f32.mrb[0].mxu0
    %v1554 = vadd.f32 0.0, %v1553
    %1555 = vdwg.mxu0
    %v1556 = vrcp.pop %v1550
    %v1557 = vrcp.pop %v1554
    %v1558 = vmul.f32 %v1548, %v1556
    %v1559 = vmul.f32 %v1552, %v1557
    %v1560 = vpack.c.bf16 %v1559, %v1558
    %1561 = vst [vmem:[#allocation5] sm:$0xff] %v1560
    %v1562 = vld [vmem:[#allocation2 + $0x8] sm:$0xff]
    %v1563 = vld [vmem:[#allocation3 + $0x8] sm:$0xff]
    %v1564 = vld [vmem:[#allocation4 + $0x8] sm:$0xff]
    %v1565 = vmul.bf16 %v1563, %v1433
    %v1566 = vmul.bf16 %v1563, %v1434
    %v1567 = vmul.bf16 %v1563, %v1435
    %v1568 = vmul.bf16 %v1563, %v1436
    %v1569 = vmul.bf16 %v1563, %v1437
    %v1570 = vmul.bf16 %v1563, %v1438
    %v1571 = vmul.bf16 %v1563, %v1439
    %v1572 = vmul.bf16 %v1563, %v1440
    %v1573 = vmul.bf16 %v1564, %v1433
    %v1574 = vmul.bf16 %v1564, %v1434
    %v1575 = vmul.bf16 %v1564, %v1435
    %v1576 = vmul.bf16 %v1564, %v1436
    %v1577 = vmul.bf16 %v1564, %v1437
    %v1578 = vmul.bf16 %v1564, %v1438
    %v1579 = vmul.bf16 %v1564, %v1439
    %v1580 = vmul.bf16 %v1564, %v1440
    %1581 = vmatprep.subr.bf16.mxu0 0
    %1582 = vmatpush1.bf16.xpose.msra.mxu0 %v1565
    %1583 = vmatprep.subr.bf16.mxu0 0
    %1584 = vmatpush1.bf16.xpose.msra.mxu0 %v1566
    %1585 = vmatprep.subr.bf16.mxu0 0
    %1586 = vmatpush1.bf16.xpose.msra.mxu0 %v1567
    %1587 = vmatprep.subr.bf16.mxu0 0
    %1588 = vmatpush1.bf16.xpose.msra.mxu0 %v1568
    %1589 = vmatprep.subr.bf16.mxu0 0
    %1590 = vmatpush1.bf16.xpose.msra.mxu0 %v1569
    %1591 = vmatprep.subr.bf16.mxu0 0
    %1592 = vmatpush1.bf16.xpose.msra.mxu0 %v1570
    %1593 = vmatprep.subr.bf16.mxu0 0
    %1594 = vmatpush1.bf16.xpose.msra.mxu0 %v1571
    %1595 = vmatprep.subr.bf16.mxu0 0
    %1596 = vmatpush1.bf16.xpose.msra.mxu0 %v1572
    %1597 = vmatprep.subr.bf16.mxu0 0
    %1598 = vmatpush1.bf16.xpose.msra.mxu0 0
    %1599 = vmatprep.subr.bf16.mxu0 0
    %1600 = vmatpush1.bf16.xpose.msra.mxu0 0
    %1601 = vmatprep.subr.bf16.mxu0 0
    %1602 = vmatpush1.bf16.xpose.msra.mxu0 0
    %1603 = vmatprep.subr.bf16.mxu0 0
    %1604 = vmatpush1.bf16.xpose.msra.mxu0 0
    %1605 = vmatprep.subr.bf16.mxu0 0
    %1606 = vmatpush1.bf16.xpose.msra.mxu0 0
    %1607 = vmatprep.subr.bf16.mxu0 0
    %1608 = vmatpush1.bf16.xpose.msra.mxu0 0
    %1609 = vmatprep.subr.bf16.mxu0 0
    %1610 = vmatpush1.bf16.xpose.msra.mxu0 0
    %1611 = vmatprep.subr.bf16.mxu0 0
    %1612 = vmatpush1.bf16.xpose.msra.mxu0 0
    %1613 = vmatprep.mubr.bf16.mxu0 0
    %1614 = vmatmul.mubr.bf16.gmra.mrb[0].mxu0 %v1562
    %v1615 = vpop.f32.mrb[0].mxu0
    %v1616 = vadd.f32 0.0, %v1615
    %v1617 = vpop.f32.mrb[0].mxu0
    %v1618 = vpop.f32.mrb[0].mxu0
    %v1619 = vadd.f32 0.0, %v1618
    %v1620 = vpop.f32.mrb[0].mxu0
    %1621 = vdwg.mxu0
    %v1622 = vmul.f32 %v1616, 0.25
    %v1623 = vmul.f32 %v1619, 0.25
    %v1624 = vmul.f32 %v1622, 1.442695
    %v1625 = vpow.pop %v1624
    %v1626 = vmul.f32 %v1623, 1.442695
    %v1627 = vpow.pop %v1626
    %v1628 = vpack.c.bf16 %v1627, %v1625
    %1629 = vmatprep.subr.bf16.mxu0 %v1433
    %1630 = vmatpush1.bf16.msra.mxu0 %v1573
    %1631 = vmatprep.subr.bf16.mxu0 %v1434
    %1632 = vmatpush1.bf16.msra.mxu0 %v1574
    %1633 = vmatprep.subr.bf16.mxu0 %v1435
    %1634 = vmatpush1.bf16.msra.mxu0 %v1575
    %1635 = vmatprep.subr.bf16.mxu0 %v1436
    %1636 = vmatpush1.bf16.msra.mxu0 %v1576
    %1637 = vmatprep.subr.bf16.mxu0 %v1437
    %1638 = vmatpush1.bf16.msra.mxu0 %v1577
    %1639 = vmatprep.subr.bf16.mxu0 %v1438
    %1640 = vmatpush1.bf16.msra.mxu0 %v1578
    %1641 = vmatprep.subr.bf16.mxu0 %v1439
    %1642 = vmatpush1.bf16.msra.mxu0 %v1579
    %1643 = vmatprep.subr.bf16.mxu0 %v1440
    %1644 = vmatpush1.bf16.msra.mxu0 %v1580
    %1645 = vmatprep.subr.bf16.mxu0 0
    %1646 = vmatpush1.bf16.msra.mxu0 0
    %1647 = vmatprep.subr.bf16.mxu0 0
    %1648 = vmatpush1.bf16.msra.mxu0 0
    %1649 = vmatprep.subr.bf16.mxu0 0
    %1650 = vmatpush1.bf16.msra.mxu0 0
    %1651 = vmatprep.subr.bf16.mxu0 0
    %1652 = vmatpush1.bf16.msra.mxu0 0
    %1653 = vmatprep.subr.bf16.mxu0 0
    %1654 = vmatpush1.bf16.msra.mxu0 0
    %1655 = vmatprep.subr.bf16.mxu0 0
    %1656 = vmatpush1.bf16.msra.mxu0 0
    %1657 = vmatprep.subr.bf16.mxu0 0
    %1658 = vmatpush1.bf16.msra.mxu0 0
    %1659 = vmatprep.subr.bf16.mxu0 0
    %1660 = vmatpush1.bf16.msra.mxu0 0
    %1661 = vmatprep.mubr.bf16.mxu0 0
    %1662 = vmatmul.mubr.bf16.gmra.mrb[0].mxu0 %v1628
    %v1663 = vpop.f32.mrb[0].mxu0
    %v1664 = vadd.f32 0.0, %v1663
    %v1665 = vpop.f32.mrb[0].mxu0
    %v1666 = vadd.f32 0.0, %v1665
    %v1667 = vpop.f32.mrb[0].mxu0
    %v1668 = vadd.f32 0.0, %v1667
    %v1669 = vpop.f32.mrb[0].mxu0
    %v1670 = vadd.f32 0.0, %v1669
    %1671 = vdwg.mxu0
    %v1672 = vrcp.pop %v1666
    %v1673 = vrcp.pop %v1670
    %v1674 = vmul.f32 %v1664, %v1672
    %v1675 = vmul.f32 %v1668, %v1673
    %v1676 = vpack.c.bf16 %v1675, %v1674
    %1677 = vst [vmem:[#allocation5 + $0x8] sm:$0xff] %v1676
    %v1678 = vld [vmem:[#allocation2 + $0x10] sm:$0xff]
    %v1679 = vld [vmem:[#allocation3 + $0x10] sm:$0xff]
    %v1680 = vld [vmem:[#allocation4 + $0x10] sm:$0xff]
    %v1681 = vmul.bf16 %v1679, %v1433
    %v1682 = vmul.bf16 %v1679, %v1434
    %v1683 = vmul.bf16 %v1679, %v1435
    %v1684 = vmul.bf16 %v1679, %v1436
    %v1685 = vmul.bf16 %v1679, %v1437
    %v1686 = vmul.bf16 %v1679, %v1438
    %v1687 = vmul.bf16 %v1679, %v1439
    %v1688 = vmul.bf16 %v1679, %v1440
    %v1689 = vmul.bf16 %v1680, %v1433
    %v1690 = vmul.bf16 %v1680, %v1434
    %v1691 = vmul.bf16 %v1680, %v1435
    %v1692 = vmul.bf16 %v1680, %v1436
    %v1693 = vmul.bf16 %v1680, %v1437
    %v1694 = vmul.bf16 %v1680, %v1438
    %v1695 = vmul.bf16 %v1680, %v1439
    %v1696 = vmul.bf16 %v1680, %v1440
    %1697 = vmatprep.subr.bf16.mxu0 0
    %1698 = vmatpush1.bf16.xpose.msra.mxu0 %v1681
    %1699 = vmatprep.subr.bf16.mxu0 0
    %1700 = vmatpush1.bf16.xpose.msra.mxu0 %v1682
    %1701 = vmatprep.subr.bf16.mxu0 0
    %1702 = vmatpush1.bf16.xpose.msra.mxu0 %v1683
    %1703 = vmatprep.subr.bf16.mxu0 0
    %1704 = vmatpush1.bf16.xpose.msra.mxu0 %v1684
    %1705 = vmatprep.subr.bf16.mxu0 0
    %1706 = vmatpush1.bf16.xpose.msra.mxu0 %v1685
    %1707 = vmatprep.subr.bf16.mxu0 0
    %1708 = vmatpush1.bf16.xpose.msra.mxu0 %v1686
    %1709 = vmatprep.subr.bf16.mxu0 0
    %1710 = vmatpush1.bf16.xpose.msra.mxu0 %v1687
    %1711 = vmatprep.subr.bf16.mxu0 0
    %1712 = vmatpush1.bf16.xpose.msra.mxu0 %v1688
    %1713 = vmatprep.subr.bf16.mxu0 0
    %1714 = vmatpush1.bf16.xpose.msra.mxu0 0
    %1715 = vmatprep.subr.bf16.mxu0 0
    %1716 = vmatpush1.bf16.xpose.msra.mxu0 0
    %1717 = vmatprep.subr.bf16.mxu0 0
    %1718 = vmatpush1.bf16.xpose.msra.mxu0 0
    %1719 = vmatprep.subr.bf16.mxu0 0
    %1720 = vmatpush1.bf16.xpose.msra.mxu0 0
    %1721 = vmatprep.subr.bf16.mxu0 0
    %1722 = vmatpush1.bf16.xpose.msra.mxu0 0
    %1723 = vmatprep.subr.bf16.mxu0 0
    %1724 = vmatpush1.bf16.xpose.msra.mxu0 0
    %1725 = vmatprep.subr.bf16.mxu0 0
    %1726 = vmatpush1.bf16.xpose.msra.mxu0 0
    %1727 = vmatprep.subr.bf16.mxu0 0
    %1728 = vmatpush1.bf16.xpose.msra.mxu0 0
    %1729 = vmatprep.mubr.bf16.mxu0 0
    %1730 = vmatmul.mubr.bf16.gmra.mrb[0].mxu0 %v1678
    %v1731 = vpop.f32.mrb[0].mxu0
    %v1732 = vadd.f32 0.0, %v1731
    %v1733 = vpop.f32.mrb[0].mxu0
    %v1734 = vpop.f32.mrb[0].mxu0
    %v1735 = vadd.f32 0.0, %v1734
    %v1736 = vpop.f32.mrb[0].mxu0
    %1737 = vdwg.mxu0
    %v1738 = vmul.f32 %v1732, 0.25
    %v1739 = vmul.f32 %v1735, 0.25
    %v1740 = vmul.f32 %v1738, 1.442695
    %v1741 = vpow.pop %v1740
    %v1742 = vmul.f32 %v1739, 1.442695
    %v1743 = vpow.pop %v1742
    %v1744 = vpack.c.bf16 %v1743, %v1741
    %1745 = vmatprep.subr.bf16.mxu0 %v1433
    %1746 = vmatpush1.bf16.msra.mxu0 %v1689
    %1747 = vmatprep.subr.bf16.mxu0 %v1434
    %1748 = vmatpush1.bf16.msra.mxu0 %v1690
    %1749 = vmatprep.subr.bf16.mxu0 %v1435
    %1750 = vmatpush1.bf16.msra.mxu0 %v1691
    %1751 = vmatprep.subr.bf16.mxu0 %v1436
    %1752 = vmatpush1.bf16.msra.mxu0 %v1692
    %1753 = vmatprep.subr.bf16.mxu0 %v1437
    %1754 = vmatpush1.bf16.msra.mxu0 %v1693
    %1755 = vmatprep.subr.bf16.mxu0 %v1438
    %1756 = vmatpush1.bf16.msra.mxu0 %v1694
    %1757 = vmatprep.subr.bf16.mxu0 %v1439
    %1758 = vmatpush1.bf16.msra.mxu0 %v1695
    %1759 = vmatprep.subr.bf16.mxu0 %v1440
    %1760 = vmatpush1.bf16.msra.mxu0 %v1696
    %1761 = vmatprep.subr.bf16.mxu0 0
    %1762 = vmatpush1.bf16.msra.mxu0 0
    %1763 = vmatprep.subr.bf16.mxu0 0
    %1764 = vmatpush1.bf16.msra.mxu0 0
    %1765 = vmatprep.subr.bf16.mxu0 0
    %1766 = vmatpush1.bf16.msra.mxu0 0
    %1767 = vmatprep.subr.bf16.mxu0 0
    %1768 = vmatpush1.bf16.msra.mxu0 0
    %1769 = vmatprep.subr.bf16.mxu0 0
    %1770 = vmatpush1.bf16.msra.mxu0 0
    %1771 = vmatprep.subr.bf16.mxu0 0
    %1772 = vmatpush1.bf16.msra.mxu0 0
    %1773 = vmatprep.subr.bf16.mxu0 0
    %1774 = vmatpush1.bf16.msra.mxu0 0
    %1775 = vmatprep.subr.bf16.mxu0 0
    %1776 = vmatpush1.bf16.msra.mxu0 0
    %1777 = vmatprep.mubr.bf16.mxu0 0
    %1778 = vmatmul.mubr.bf16.gmra.mrb[0].mxu0 %v1744
    %v1779 = vpop.f32.mrb[0].mxu0
    %v1780 = vadd.f32 0.0, %v1779
    %v1781 = vpop.f32.mrb[0].mxu0
    %v1782 = vadd.f32 0.0, %v1781
    %v1783 = vpop.f32.mrb[0].mxu0
    %v1784 = vadd.f32 0.0, %v1783
    %v1785 = vpop.f32.mrb[0].mxu0
    %v1786 = vadd.f32 0.0, %v1785
    %1787 = vdwg.mxu0
    %v1788 = vrcp.pop %v1782
    %v1789 = vrcp.pop %v1786
    %v1790 = vmul.f32 %v1780, %v1788
    %v1791 = vmul.f32 %v1784, %v1789
    %v1792 = vpack.c.bf16 %v1791, %v1790
    %1793 = vst [vmem:[#allocation5 + $0x10] sm:$0xff] %v1792
    %v1794 = vld [vmem:[#allocation2 + $0x18] sm:$0xff]
    %v1795 = vld [vmem:[#allocation3 + $0x18] sm:$0xff]
    %v1796 = vld [vmem:[#allocation4 + $0x18] sm:$0xff]
    %v1797 = vmul.bf16 %v1795, %v1433
    %v1798 = vmul.bf16 %v1795, %v1434
    %v1799 = vmul.bf16 %v1795, %v1435
    %v1800 = vmul.bf16 %v1795, %v1436
    %v1801 = vmul.bf16 %v1795, %v1437
    %v1802 = vmul.bf16 %v1795, %v1438
    %v1803 = vmul.bf16 %v1795, %v1439
    %v1804 = vmul.bf16 %v1795, %v1440
    %v1805 = vmul.bf16 %v1796, %v1433
    %v1806 = vmul.bf16 %v1796, %v1434
    %v1807 = vmul.bf16 %v1796, %v1435
    %v1808 = vmul.bf16 %v1796, %v1436
    %v1809 = vmul.bf16 %v1796, %v1437
    %v1810 = vmul.bf16 %v1796, %v1438
    %v1811 = vmul.bf16 %v1796, %v1439
    %v1812 = vmul.bf16 %v1796, %v1440
    %1813 = vmatprep.subr.bf16.mxu0 0
    %1814 = vmatpush1.bf16.xpose.msra.mxu0 %v1797
    %1815 = vmatprep.subr.bf16.mxu0 0
    %1816 = vmatpush1.bf16.xpose.msra.mxu0 %v1798
    %1817 = vmatprep.subr.bf16.mxu0 0
    %1818 = vmatpush1.bf16.xpose.msra.mxu0 %v1799
    %1819 = vmatprep.subr.bf16.mxu0 0
    %1820 = vmatpush1.bf16.xpose.msra.mxu0 %v1800
    %1821 = vmatprep.subr.bf16.mxu0 0
    %1822 = vmatpush1.bf16.xpose.msra.mxu0 %v1801
    %1823 = vmatprep.subr.bf16.mxu0 0
    %1824 = vmatpush1.bf16.xpose.msra.mxu0 %v1802
    %1825 = vmatprep.subr.bf16.mxu0 0
    %1826 = vmatpush1.bf16.xpose.msra.mxu0 %v1803
    %1827 = vmatprep.subr.bf16.mxu0 0
    %1828 = vmatpush1.bf16.xpose.msra.mxu0 %v1804
    %1829 = vmatprep.subr.bf16.mxu0 0
    %1830 = vmatpush1.bf16.xpose.msra.mxu0 0
    %1831 = vmatprep.subr.bf16.mxu0 0
    %1832 = vmatpush1.bf16.xpose.msra.mxu0 0
    %1833 = vmatprep.subr.bf16.mxu0 0
    %1834 = vmatpush1.bf16.xpose.msra.mxu0 0
    %1835 = vmatprep.subr.bf16.mxu0 0
    %1836 = vmatpush1.bf16.xpose.msra.mxu0 0
    %1837 = vmatprep.subr.bf16.mxu0 0
    %1838 = vmatpush1.bf16.xpose.msra.mxu0 0
    %1839 = vmatprep.subr.bf16.mxu0 0
    %1840 = vmatpush1.bf16.xpose.msra.mxu0 0
    %1841 = vmatprep.subr.bf16.mxu0 0
    %1842 = vmatpush1.bf16.xpose.msra.mxu0 0
    %1843 = vmatprep.subr.bf16.mxu0 0
    %1844 = vmatpush1.bf16.xpose.msra.mxu0 0
    %1845 = vmatprep.mubr.bf16.mxu0 0
    %1846 = vmatmul.mubr.bf16.gmra.mrb[0].mxu0 %v1794
    %v1847 = vpop.f32.mrb[0].mxu0
    %v1848 = vadd.f32 0.0, %v1847
    %v1849 = vpop.f32.mrb[0].mxu0
    %v1850 = vpop.f32.mrb[0].mxu0
    %v1851 = vadd.f32 0.0, %v1850
    %v1852 = vpop.f32.mrb[0].mxu0
    %1853 = vdwg.mxu0
    %v1854 = vmul.f32 %v1848, 0.25
    %v1855 = vmul.f32 %v1851, 0.25
    %v1856 = vmul.f32 %v1854, 1.442695
    %v1857 = vpow.pop %v1856
    %v1858 = vmul.f32 %v1855, 1.442695
    %v1859 = vpow.pop %v1858
    %v1860 = vpack.c.bf16 %v1859, %v1857
    %1861 = vmatprep.subr.bf16.mxu0 %v1433
    %1862 = vmatpush1.bf16.msra.mxu0 %v1805
    %1863 = vmatprep.subr.bf16.mxu0 %v1434
    %1864 = vmatpush1.bf16.msra.mxu0 %v1806
    %1865 = vmatprep.subr.bf16.mxu0 %v1435
    %1866 = vmatpush1.bf16.msra.mxu0 %v1807
    %1867 = vmatprep.subr.bf16.mxu0 %v1436
    %1868 = vmatpush1.bf16.msra.mxu0 %v1808
    %1869 = vmatprep.subr.bf16.mxu0 %v1437
    %1870 = vmatpush1.bf16.msra.mxu0 %v1809
    %1871 = vmatprep.subr.bf16.mxu0 %v1438
    %1872 = vmatpush1.bf16.msra.mxu0 %v1810
    %1873 = vmatprep.subr.bf16.mxu0 %v1439
    %1874 = vmatpush1.bf16.msra.mxu0 %v1811
    %1875 = vmatprep.subr.bf16.mxu0 %v1440
    %1876 = vmatpush1.bf16.msra.mxu0 %v1812
    %1877 = vmatprep.subr.bf16.mxu0 0
    %1878 = vmatpush1.bf16.msra.mxu0 0
    %1879 = vmatprep.subr.bf16.mxu0 0
    %1880 = vmatpush1.bf16.msra.mxu0 0
    %1881 = vmatprep.subr.bf16.mxu0 0
    %1882 = vmatpush1.bf16.msra.mxu0 0
    %1883 = vmatprep.subr.bf16.mxu0 0
    %1884 = vmatpush1.bf16.msra.mxu0 0
    %1885 = vmatprep.subr.bf16.mxu0 0
    %1886 = vmatpush1.bf16.msra.mxu0 0
    %1887 = vmatprep.subr.bf16.mxu0 0
    %1888 = vmatpush1.bf16.msra.mxu0 0
    %1889 = vmatprep.subr.bf16.mxu0 0
    %1890 = vmatpush1.bf16.msra.mxu0 0
    %1891 = vmatprep.subr.bf16.mxu0 0
    %1892 = vmatpush1.bf16.msra.mxu0 0
    %1893 = vmatprep.mubr.bf16.mxu0 0
    %1894 = vmatmul.mubr.bf16.gmra.mrb[0].mxu0 %v1860
    %v1895 = vpop.f32.mrb[0].mxu0
    %v1896 = vadd.f32 0.0, %v1895
    %v1897 = vpop.f32.mrb[0].mxu0
    %v1898 = vadd.f32 0.0, %v1897
    %v1899 = vpop.f32.mrb[0].mxu0
    %v1900 = vadd.f32 0.0, %v1899
    %v1901 = vpop.f32.mrb[0].mxu0
    %v1902 = vadd.f32 0.0, %v1901
    %1903 = vdwg.mxu0
    %v1904 = vrcp.pop %v1898
    %v1905 = vrcp.pop %v1902
    %v1906 = vmul.f32 %v1896, %v1904
    %v1907 = vmul.f32 %v1900, %v1905
    %v1908 = vpack.c.bf16 %v1907, %v1906
    %1909 = vst [vmem:[#allocation5 + $0x18] sm:$0xff] %v1908
    %v1910 = vld [vmem:[#allocation5] sm:$0xff]
    %v1911 = vld [vmem:[#allocation5 + $0x8] sm:$0xff]
    %v1912 = vld [vmem:[#allocation5 + $0x10] sm:$0xff]
    %v1913 = vld [vmem:[#allocation5 + $0x18] sm:$0xff]
    %v1914 = vld [vmem:[#allocation14] sm:$0xf]
    %v1915 = vld [vmem:[#allocation14 + $0x4] sm:$0xf]
    %v1916 = vld [vmem:[#allocation14 + $0x8] sm:$0xf]
    %v1917 = vld [vmem:[#allocation14 + $0xc] sm:$0xf]
    %v1918 = vld [vmem:[#allocation14 + $0x10] sm:$0xf]
    %v1919 = vld [vmem:[#allocation14 + $0x14] sm:$0xf]
    %v1920 = vld [vmem:[#allocation14 + $0x18] sm:$0xf]
    %v1921 = vld [vmem:[#allocation14 + $0x1c] sm:$0xf]
    %v1922 = vld [vmem:[#allocation14 + $0x20] sm:$0xf]
    %v1923 = vld [vmem:[#allocation14 + $0x24] sm:$0xf]
    %v1924 = vld [vmem:[#allocation14 + $0x28] sm:$0xf]
    %v1925 = vld [vmem:[#allocation14 + $0x2c] sm:$0xf]
    %v1926 = vld [vmem:[#allocation14 + $0x30] sm:$0xf]
    %v1927 = vld [vmem:[#allocation14 + $0x34] sm:$0xf]
    %v1928 = vld [vmem:[#allocation14 + $0x38] sm:$0xf]
    %v1929 = vld [vmem:[#allocation14 + $0x3c] sm:$0xf]
    %v1930 = vld [vmem:[%s6] sm:$0x1]
    %v1932 = vlaneseq
    %v1933 = vshrl.u32 %v1932, 7
    %v1934 = vsub.s32 0, %v1933
    %v1935 = vrot.slane %v1930, %v1934
    %v1953 = vunpack.c.l.b16 %v1914
    %v1954 = vunpack.c.l.b16 %v1915
    %v1955 = vunpack.c.l.b16 %v1916
    %v1956 = vunpack.c.l.b16 %v1917
    %v1957 = vunpack.c.l.b16 %v1918
    %v1958 = vunpack.c.l.b16 %v1919
    %v1959 = vunpack.c.l.b16 %v1920
    %v1960 = vunpack.c.l.b16 %v1921
    %v1961 = vunpack.c.l.b16 %v1922
    %v1962 = vunpack.c.l.b16 %v1923
    %v1963 = vunpack.c.l.b16 %v1924
    %v1964 = vunpack.c.l.b16 %v1925
    %v1965 = vunpack.c.l.b16 %v1926
    %v1966 = vunpack.c.l.b16 %v1927
    %v1967 = vunpack.c.l.b16 %v1928
    %v1968 = vunpack.c.l.b16 %v1929
    %v1969 = vpack.c.b16 %v1954, %v1953
    %v1970 = vpack.c.b16 %v1956, %v1955
    %v1971 = vpack.c.b16 %v1958, %v1957
    %v1972 = vpack.c.b16 %v1960, %v1959
    %v1973 = vpack.c.b16 %v1962, %v1961
    %v1974 = vpack.c.b16 %v1964, %v1963
    %v1975 = vpack.c.b16 %v1966, %v1965
    %v1976 = vpack.c.b16 %v1968, %v1967
    %1985 = vmatprep.subr.bf16.mxu0 0
    %1986 = vmatpush1.bf16.msra.mxu0 %v1969
    %1987 = vmatprep.subr.bf16.mxu0 0
    %1988 = vmatpush1.bf16.msra.mxu0 %v1970
    %1989 = vmatprep.subr.bf16.mxu0 0
    %1990 = vmatpush1.bf16.msra.mxu0 %v1971
    %1991 = vmatprep.subr.bf16.mxu0 0
    %1992 = vmatpush1.bf16.msra.mxu0 %v1972
    %1993 = vmatprep.subr.bf16.mxu0 0
    %1994 = vmatpush1.bf16.msra.mxu0 %v1973
    %1995 = vmatprep.subr.bf16.mxu0 0
    %1996 = vmatpush1.bf16.msra.mxu0 %v1974
    %1997 = vmatprep.subr.bf16.mxu0 0
    %1998 = vmatpush1.bf16.msra.mxu0 %v1975
    %1999 = vmatprep.subr.bf16.mxu0 0
    %2000 = vmatpush1.bf16.msra.mxu0 %v1976
    %2001 = vmatprep.subr.bf16.mxu0 0
    %2002 = vmatpush1.bf16.msra.mxu0 0
    %2003 = vmatprep.subr.bf16.mxu0 0
    %2004 = vmatpush1.bf16.msra.mxu0 0
    %2005 = vmatprep.subr.bf16.mxu0 0
    %2006 = vmatpush1.bf16.msra.mxu0 0
    %2007 = vmatprep.subr.bf16.mxu0 0
    %2008 = vmatpush1.bf16.msra.mxu0 0
    %2009 = vmatprep.subr.bf16.mxu0 0
    %2010 = vmatpush1.bf16.msra.mxu0 0
    %2011 = vmatprep.subr.bf16.mxu0 0
    %2012 = vmatpush1.bf16.msra.mxu0 0
    %2013 = vmatprep.subr.bf16.mxu0 0
    %2014 = vmatpush1.bf16.msra.mxu0 0
    %2015 = vmatprep.subr.bf16.mxu0 0
    %2016 = vmatpush1.bf16.msra.mxu0 0
    %2017 = vmatprep.mubr.bf16.mxu0 0
    %2018 = vmatmul.mubr.bf16.gmra.mrb[0].mxu0 %v1910
    %v2019 = vpop.f32.mrb[0].mxu0
    %v2020 = vadd.f32 %v1935, %v2019
    %v2021 = vpop.f32.mrb[0].mxu0
    %v2022 = vpop.f32.mrb[0].mxu0
    %v2023 = vadd.f32 %v1935, %v2022
    %v2024 = vpop.f32.mrb[0].mxu0
    %2025 = vmatprep.mubr.bf16.mxu0 0
    %2026 = vmatmul.mubr.bf16.gmra.mrb[0].mxu0 %v1911
    %v2027 = vpop.f32.mrb[0].mxu0
    %v2028 = vadd.f32 %v1935, %v2027
    %v2029 = vpop.f32.mrb[0].mxu0
    %v2030 = vpop.f32.mrb[0].mxu0
    %v2031 = vadd.f32 %v1935, %v2030
    %v2032 = vpop.f32.mrb[0].mxu0
    %2033 = vmatprep.mubr.bf16.mxu0 0
    %2034 = vmatmul.mubr.bf16.gmra.mrb[0].mxu0 %v1912
    %v2035 = vpop.f32.mrb[0].mxu0
    %v2036 = vadd.f32 %v1935, %v2035
    %v2037 = vpop.f32.mrb[0].mxu0
    %v2038 = vpop.f32.mrb[0].mxu0
    %v2039 = vadd.f32 %v1935, %v2038
    %v2040 = vpop.f32.mrb[0].mxu0
    %2041 = vmatprep.mubr.bf16.mxu0 0
    %2042 = vmatmul.mubr.bf16.gmra.mrb[0].mxu0 %v1913
    %v2043 = vpop.f32.mrb[0].mxu0
    %v2044 = vadd.f32 %v1935, %v2043
    %v2045 = vpop.f32.mrb[0].mxu0
    %v2046 = vpop.f32.mrb[0].mxu0
    %v2047 = vadd.f32 %v1935, %v2046
    %v2048 = vpop.f32.mrb[0].mxu0
    %2049 = vdwg.mxu0
    %v2050 = vadd.f32 %v2020, %v458
    %v2051 = vadd.f32 %v2023, %v462
    %v2052 = vadd.f32 %v2028, %v468
    %v2053 = vadd.f32 %v2031, %v472
    %v2054 = vadd.f32 %v2036, %v478
    %v2055 = vadd.f32 %v2039, %v482
    %v2056 = vadd.f32 %v2044, %v488
    %v2057 = vadd.f32 %v2047, %v492
    %2058 = vadd.xlane.f32.xlu0 %v2050
    %v2059 = vpop.xlane.xlu0 %2058
    %2060 = vadd.xlane.f32.xlu0 %v2051
    %v2061 = vpop.xlane.xlu0 %2060
    %2062 = vadd.xlane.f32.xlu0 %v2052
    %v2063 = vpop.xlane.xlu0 %2062
    %2064 = vadd.xlane.f32.xlu0 %v2053
    %v2065 = vpop.xlane.xlu0 %2064
    %2066 = vadd.xlane.f32.xlu0 %v2054
    %v2067 = vpop.xlane.xlu0 %2066
    %2068 = vadd.xlane.f32.xlu0 %v2055
    %v2069 = vpop.xlane.xlu0 %2068
    %2070 = vadd.xlane.f32.xlu0 %v2056
    %v2071 = vpop.xlane.xlu0 %2070
    %2072 = vadd.xlane.f32.xlu0 %v2057
    %v2073 = vpop.xlane.xlu0 %2072
    %v2074 = vrcp.pop 128.0
    %v2075 = vmul.f32 %v2059, %v2074
    %v2076 = vmul.f32 %v2061, %v2074
    %v2077 = vmul.f32 %v2063, %v2074
    %v2078 = vmul.f32 %v2065, %v2074
    %v2079 = vmul.f32 %v2067, %v2074
    %v2080 = vmul.f32 %v2069, %v2074
    %v2081 = vmul.f32 %v2071, %v2074
    %v2082 = vmul.f32 %v2073, %v2074
    %v2083 = vsub.f32 %v2050, %v2075
    %v2084 = vsub.f32 %v2051, %v2076
    %v2085 = vsub.f32 %v2052, %v2077
    %v2086 = vsub.f32 %v2053, %v2078
    %v2087 = vsub.f32 %v2054, %v2079
    %v2088 = vsub.f32 %v2055, %v2080
    %v2089 = vsub.f32 %v2056, %v2081
    %v2090 = vsub.f32 %v2057, %v2082
    %v2091 = vmul.f32 %v2083, %v2083
    %v2092 = vmul.f32 %v2084, %v2084
    %v2093 = vmul.f32 %v2085, %v2085
    %v2094 = vmul.f32 %v2086, %v2086
    %v2095 = vmul.f32 %v2087, %v2087
    %v2096 = vmul.f32 %v2088, %v2088
    %v2097 = vmul.f32 %v2089, %v2089
    %v2098 = vmul.f32 %v2090, %v2090
    %2099 = vadd.xlane.f32.xlu0 %v2091
    %v2100 = vpop.xlane.xlu0 %2099
    %2101 = vadd.xlane.f32.xlu0 %v2092
    %v2102 = vpop.xlane.xlu0 %2101
    %2103 = vadd.xlane.f32.xlu0 %v2093
    %v2104 = vpop.xlane.xlu0 %2103
    %2105 = vadd.xlane.f32.xlu0 %v2094
    %v2106 = vpop.xlane.xlu0 %2105
    %2107 = vadd.xlane.f32.xlu0 %v2095
    %v2108 = vpop.xlane.xlu0 %2107
    %2109 = vadd.xlane.f32.xlu0 %v2096
    %v2110 = vpop.xlane.xlu0 %2109
    %2111 = vadd.xlane.f32.xlu0 %v2097
    %v2112 = vpop.xlane.xlu0 %2111
    %2113 = vadd.xlane.f32.xlu0 %v2098
    %v2114 = vpop.xlane.xlu0 %2113
    %v2115 = vmul.f32 %v2100, %v2074
    %v2116 = vmul.f32 %v2102, %v2074
    %v2117 = vmul.f32 %v2104, %v2074
    %v2118 = vmul.f32 %v2106, %v2074
    %v2119 = vmul.f32 %v2108, %v2074
    %v2120 = vmul.f32 %v2110, %v2074
    %v2121 = vmul.f32 %v2112, %v2074
    %v2122 = vmul.f32 %v2114, %v2074
    %v2123 = vadd.f32 %v2115, 1e-05
    %v2124 = vadd.f32 %v2116, 1e-05
    %v2125 = vadd.f32 %v2117, 1e-05
    %v2126 = vadd.f32 %v2118, 1e-05
    %v2127 = vadd.f32 %v2119, 1e-05
    %v2128 = vadd.f32 %v2120, 1e-05
    %v2129 = vadd.f32 %v2121, 1e-05
    %v2130 = vadd.f32 %v2122, 1e-05
    %v2131 = vrsqrt.pop %v2123
    %v2132 = vrsqrt.pop %v2124
    %v2133 = vrsqrt.pop %v2125
    %v2134 = vrsqrt.pop %v2126
    %v2135 = vrsqrt.pop %v2127
    %v2136 = vrsqrt.pop %v2128
    %v2137 = vrsqrt.pop %v2129
    %v2138 = vrsqrt.pop %v2130
    %v2139 = vmul.f32 %v2083, %v2131
    %v2140 = vmul.f32 %v2084, %v2132
    %v2141 = vmul.f32 %v2085, %v2133
    %v2142 = vmul.f32 %v2086, %v2134
    %v2143 = vmul.f32 %v2087, %v2135
    %v2144 = vmul.f32 %v2088, %v2136
    %v2145 = vmul.f32 %v2089, %v2137
    %v2146 = vmul.f32 %v2090, %v2138
    %v2147 = vld [vmem:[%s7] sm:$0x1]
    %v2149 = vlaneseq
    %v2150 = vshrl.u32 %v2149, 7
    %v2151 = vsub.s32 0, %v2150
    %v2152 = vrot.slane %v2147, %v2151
    %v2154 = vmul.f32 %v2139, %v2152
    %v2155 = vmul.f32 %v2140, %v2152
    %v2156 = vmul.f32 %v2141, %v2152
    %v2157 = vmul.f32 %v2142, %v2152
    %v2158 = vmul.f32 %v2143, %v2152
    %v2159 = vmul.f32 %v2144, %v2152
    %v2160 = vmul.f32 %v2145, %v2152
    %v2161 = vmul.f32 %v2146, %v2152
    %v2162 = vld [vmem:[%s8] sm:$0x1]
    %v2164 = vlaneseq
    %v2165 = vshrl.u32 %v2164, 7
    %v2166 = vsub.s32 0, %v2165
    %v2167 = vrot.slane %v2162, %v2166
    %v2169 = vadd.f32 %v2154, %v2167
    %v2170 = vadd.f32 %v2155, %v2167
    %v2171 = vadd.f32 %v2156, %v2167
    %v2172 = vadd.f32 %v2157, %v2167
    %v2173 = vadd.f32 %v2158, %v2167
    %v2174 = vadd.f32 %v2159, %v2167
    %v2175 = vadd.f32 %v2160, %v2167
    %v2176 = vadd.f32 %v2161, %v2167
    %v2177 = vmul.f32 %v2169, 0.5
    %v2178 = vmul.f32 %v2170, 0.5
    %v2179 = vmul.f32 %v2171, 0.5
    %v2180 = vmul.f32 %v2172, 0.5
    %v2181 = vmul.f32 %v2173, 0.5
    %v2182 = vmul.f32 %v2174, 0.5
    %v2183 = vmul.f32 %v2175, 0.5
    %v2184 = vmul.f32 %v2176, 0.5
    %v2185 = vmul.f32 %v2169, 0.044715
    %v2186 = vmul.f32 %v2170, 0.044715
    %v2187 = vmul.f32 %v2171, 0.044715
    %v2188 = vmul.f32 %v2172, 0.044715
    %v2189 = vmul.f32 %v2173, 0.044715
    %v2190 = vmul.f32 %v2174, 0.044715
    %v2191 = vmul.f32 %v2175, 0.044715
    %v2192 = vmul.f32 %v2176, 0.044715
    %v2193 = vmul.f32 %v2185, %v2169
    %v2194 = vmul.f32 %v2186, %v2170
    %v2195 = vmul.f32 %v2187, %v2171
    %v2196 = vmul.f32 %v2188, %v2172
    %v2197 = vmul.f32 %v2189, %v2173
    %v2198 = vmul.f32 %v2190, %v2174
    %v2199 = vmul.f32 %v2191, %v2175
    %v2200 = vmul.f32 %v2192, %v2176
    %v2201 = vmul.f32 %v2193, %v2169
    %v2202 = vmul.f32 %v2194, %v2170
    %v2203 = vmul.f32 %v2195, %v2171
    %v2204 = vmul.f32 %v2196, %v2172
    %v2205 = vmul.f32 %v2197, %v2173
    %v2206 = vmul.f32 %v2198, %v2174
    %v2207 = vmul.f32 %v2199, %v2175
    %v2208 = vmul.f32 %v2200, %v2176
    %v2209 = vadd.f32 %v2169, %v2201
    %v2210 = vadd.f32 %v2170, %v2202
    %v2211 = vadd.f32 %v2171, %v2203
    %v2212 = vadd.f32 %v2172, %v2204
    %v2213 = vadd.f32 %v2173, %v2205
    %v2214 = vadd.f32 %v2174, %v2206
    %v2215 = vadd.f32 %v2175, %v2207
    %v2216 = vadd.f32 %v2176, %v2208
    %v2217 = vmul.f32 %v2209, 0.7978846
    %v2218 = vmul.f32 %v2210, 0.7978846
    %v2219 = vmul.f32 %v2211, 0.7978846
    %v2220 = vmul.f32 %v2212, 0.7978846
    %v2221 = vmul.f32 %v2213, 0.7978846
    %v2222 = vmul.f32 %v2214, 0.7978846
    %v2223 = vmul.f32 %v2215, 0.7978846
    %v2224 = vmul.f32 %v2216, 0.7978846
    %v2225 = vtanh.pop %v2217
    %v2226 = vtanh.pop %v2218
    %v2227 = vtanh.pop %v2219
    %v2228 = vtanh.pop %v2220
    %v2229 = vtanh.pop %v2221
    %v2230 = vtanh.pop %v2222
    %v2231 = vtanh.pop %v2223
    %v2232 = vtanh.pop %v2224
    %v2233 = vadd.f32 %v2225, 1.0
    %v2234 = vadd.f32 %v2226, 1.0
    %v2235 = vadd.f32 %v2227, 1.0
    %v2236 = vadd.f32 %v2228, 1.0
    %v2237 = vadd.f32 %v2229, 1.0
    %v2238 = vadd.f32 %v2230, 1.0
    %v2239 = vadd.f32 %v2231, 1.0
    %v2240 = vadd.f32 %v2232, 1.0
    %v2241 = vmul.f32 %v2177, %v2233
    %v2242 = vmul.f32 %v2178, %v2234
    %v2243 = vmul.f32 %v2179, %v2235
    %v2244 = vmul.f32 %v2180, %v2236
    %v2245 = vmul.f32 %v2181, %v2237
    %v2246 = vmul.f32 %v2182, %v2238
    %v2247 = vmul.f32 %v2183, %v2239
    %v2248 = vmul.f32 %v2184, %v2240
    %2249 = vst [vmem:[#allocation15] sm:$0xff] %v2241
    %2250 = vst [vmem:[#allocation15 + $0x8] sm:$0xff] %v2242
    %2251 = vst [vmem:[#allocation15 + $0x10] sm:$0xff] %v2243
    %2252 = vst [vmem:[#allocation15 + $0x18] sm:$0xff] %v2244
    %2253 = vst [vmem:[#allocation15 + $0x20] sm:$0xff] %v2245
    %2254 = vst [vmem:[#allocation15 + $0x28] sm:$0xff] %v2246
    %2255 = vst [vmem:[#allocation15 + $0x30] sm:$0xff] %v2247
    %2256 = vst [vmem:[#allocation15 + $0x38] sm:$0xff] %v2248
    // Predicated region
    $region58: #{tpu_custom_call.1} parent=1 // pred_check
      _
    $region59: #{tpu_custom_call.1} parent=1 // pred_check_branch
      %2258 = sbr.rel (0) target = $region61
    $region60: #{tpu_custom_call.1} parent=1 // pred_region
      %s2260 = ssub.s32 1024, 1024
      %2261 = vsyncadd [#allocation8], %s2260
      %s2262 = sshll.u32 [#allocation15], 4
      %s2263 = int_to_ptr.vmem [resolvable:$true] %s2262
      %2268 = dma.vmem_to_hbm [thread:$0]  %s2263, 1024, %s9, [#allocation8], 128, 128, 8
    $region61: #{tpu_custom_call.1} parent=1 // pred_fallthru
      _
    // Predicated region
    $region62: #{tpu_custom_call.1} parent=1 // pred_check
      _
    $region63: #{tpu_custom_call.1} parent=1 // pred_check_branch
      %2270 = sbr.rel (0) target = $region65
    $region64: #{tpu_custom_call.1} parent=1 // pred_region
      %2271 = dma.done [#allocation8], 1024
    $region65: #{tpu_custom_call.1} parent=1 // pred_fallthru
      _
    %2272 = vsyncpa [#allocation7], 1
    %2273 = vsyncpa [#allocation10], 1
    %2274 = vsyncpa [#allocation13], 1
    %2275 = vsyncpa [#allocation8], 1

</llo_original>
